<compile_context>
chip_gen: v6e
topology: v6e:2x2x1
jax: 0.10.0
libtpu: 0.0.40
codegen_flags: <defaults>
</compile_context>

<pallas_src>
import jax
import jax.numpy as jnp
from jax import lax
from jax.experimental import pallas as pl
from jax.experimental.pallas import tpu as pltpu


# ---------------------------------------------------------------------------
# Kernel
# ---------------------------------------------------------------------------
def _bilstm_kernel(x_ref, wih_ref, whh_ref, b_ref, out_ref, gxf_ref, gxb_ref):
    """One batch-block grid step; both LSTM directions interleaved.

    x_ref:   (T, Bt, 3H)  bf16  time-major input block
    wih_ref: (3H, 8H)     bf16  [W_ih_fwd | W_ih_bwd]
    whh_ref: (2, H, 4H)   f32   W_hh per direction
    b_ref:   (1, 8H)      f32   [b_fwd | b_bwd] (bias_ih + bias_hh)
    out_ref: (2T, Bt, H)  f32   rows [0,T) = fwd h_t, rows [T,2T) = bwd h_t
    gxf_ref/gxb_ref: (T, Bt, 4H) f32 scratch with precomputed x @ W_ih + b
    Gate order (PyTorch): i, f, g, o.
    """
    T, Bt, threeH = x_ref.shape
    H = threeH // 3
    G = 4 * H

    # ---- hoisted input projection: one big bf16 MXU matmul, both directions --
    xb = x_ref[...].reshape(T * Bt, threeH)                       # bf16, free reshape
    gx = jnp.dot(xb, wih_ref[...], preferred_element_type=jnp.float32) + b_ref[...]
    gx = gx.reshape(T, Bt, 2 * G)                                 # free reshape
    gxf_ref[...] = gx[:, :, :G]
    gxb_ref[...] = gx[:, :, G:]

    # weight-stationary recurrent matrices (f32: small matmul, off hot path)
    whh_f = whh_ref[0]
    whh_b = whh_ref[1]

    def sigmoid(v):
        # EUP exp + approx EUP reciprocal (separate bundle slots from VPU).
        return pl.reciprocal(1.0 + jnp.exp(-v), approx=True)

    def cell(gates, c):
        if G <= 128:
            # Full-width activations (one sigmoid + one tanh over 4H lanes),
            # then cheap per-gate lane slices.
            sg = sigmoid(gates)
            tg = jnp.tanh(gates)
            i_g = sg[:, 0 * H:1 * H]
            f_g = sg[:, 1 * H:2 * H]
            o_g = sg[:, 3 * H:4 * H]
            g_g = tg[:, 2 * H:3 * H]
        else:
            i_g = sigmoid(gates[:, 0 * H:1 * H])
            f_g = sigmoid(gates[:, 1 * H:2 * H])
            g_g = jnp.tanh(gates[:, 2 * H:3 * H])
            o_g = sigmoid(gates[:, 3 * H:4 * H])
        c = f_g * c + i_g * g_g
        h = o_g * jnp.tanh(c)
        return h, c

    def body(t, carry):
        hf, cf, hb, cb = carry
        tr = T - 1 - t
        # Two independent recurrent matmuls -> interleaved on the MXU.
        gf = gxf_ref[t] + jnp.dot(hf, whh_f, preferred_element_type=jnp.float32)
        gb = gxb_ref[tr] + jnp.dot(hb, whh_b, preferred_element_type=jnp.float32)
        hf, cf = cell(gf, cf)
        hb, cb = cell(gb, cb)
        # Full-tile (Bt, H) time-major stores.
        out_ref[t] = hf.astype(out_ref.dtype)
        out_ref[T + tr] = hb.astype(out_ref.dtype)
        return hf, cf, hb, cb

    z = jnp.zeros((Bt, H), jnp.float32)
    unroll = True if T <= 16 else 2
    lax.fori_loop(0, T, body, (z, z, z, z), unroll=unroll)


# ---------------------------------------------------------------------------
# Block sizing (generation-aware VMEM budget)
# ---------------------------------------------------------------------------
def _vmem_capacity_bytes():
    try:
        info = pltpu.get_tpu_info()
        cap = getattr(info, "vmem_capacity_bytes", None)
        if cap:
            return int(cap)
    except Exception:
        pass
    return 64 * 1024 * 1024  # conservative fallback (v7x per-TC)


def _choose_blocks(B, T, H, vmem_cap):
    """Pick batch block Bt (multiple of 8) and padded batch Bp."""
    budget = int(vmem_cap * 0.55)
    # Bytes per batch row resident in one grid step:
    #   x bf16 (2 bufs): 2*T*3H*2 = 12*T*H
    #   out f32 (2 bufs, both dirs): 2*2T*H*4 = 16*T*H
    #   gate scratch f32 (both dirs): 2*T*4H*4 = 32*T*H
    per_row = 60 * T * H + 1024
    bt_cap = max(8, min(512, (budget // per_row) // 8 * 8))
    bp8 = ((B + 7) // 8) * 8
    bt = min(bt_cap, bp8)
    # Keep >= 2 grid steps when possible so v7x can shard across its 2 TCs.
    if bp8 // bt <= 1 and bt >= 16:
        bt = max(8, (bt // 2) // 8 * 8)
    bp = ((bp8 + bt - 1) // bt) * bt
    return bt, bp


# ---------------------------------------------------------------------------
# Wrapper
# ---------------------------------------------------------------------------
def bilstm_encoder_forward(x, params):
    """Mirrors BiLSTMEncoder.forward: returns U = transpose(lstm_out,1,2)[:, :, 1:]."""
    B, T, E = x.shape
    H = params["whh"].shape[1]
    assert E == 3 * H, (E, H)

    vmem_cap = _vmem_capacity_bytes()
    Bt, Bp = _choose_blocks(B, T, H, vmem_cap)

    if Bp != B:
        x = jnp.pad(x, ((0, Bp - B), (0, 0), (0, 0)))
    # Time-major + bf16 in one fused XLA pass (halves the kernel's x DMA).
    x_tm = jnp.transpose(x, (1, 0, 2)).astype(jnp.bfloat16)          # (T, Bp, 3H)

    # Static weights: big projection weights in bf16, recurrent weights in f32.
    wih = jnp.concatenate([params["wih"][0], params["wih"][1]],
                          axis=1).astype(jnp.bfloat16)               # (3H, 8H)
    bias = jnp.concatenate([params["b"][0], params["b"][1]], axis=1)  # (1, 8H) f32
    whh = params["whh"]                                               # (2, H, 4H) f32

    out = pl.pallas_call(
        _bilstm_kernel,
        out_shape=jax.ShapeDtypeStruct((2 * T, Bp, H), jnp.float32),
        grid=(Bp // Bt,),
        in_specs=[
            pl.BlockSpec((T, Bt, 3 * H), lambda b: (0, b, 0)),
            pl.BlockSpec((3 * H, 8 * H), lambda b: (0, 0)),
            pl.BlockSpec((2, H, 4 * H), lambda b: (0, 0, 0)),
            pl.BlockSpec((1, 8 * H), lambda b: (0, 0)),
        ],
        out_specs=pl.BlockSpec((2 * T, Bt, H), lambda b: (0, b, 0)),
        scratch_shapes=[
            pltpu.VMEM((T, Bt, 4 * H), jnp.float32),   # fwd gate pre-activations
            pltpu.VMEM((T, Bt, 4 * H), jnp.float32),   # bwd gate pre-activations
        ],
        compiler_params=pltpu.CompilerParams(
            dimension_semantics=("parallel",),
            vmem_limit_bytes=int(vmem_cap * 0.85),
        ),
    )(x_tm, wih, whh, bias)

    # Fused epilogue: (2T, Bp, H) -> (B, 2H, T) -> drop t=0 (single pass).
    out = out[:, :B, :]
    u = jnp.transpose(out.reshape(2, T, B, H), (2, 0, 3, 1)).reshape(B, 2 * H, T)
    return u[:, :, 1:]


# ---------------------------------------------------------------------------
# Parameter init (matches nn.LSTM(3H, H, 1, bidirectional=True) shapes)
# ---------------------------------------------------------------------------
def init_params(key, hidden_dim):
    H = hidden_dim
    k = 1.0 / jnp.sqrt(jnp.float32(H))
    keys = jax.random.split(key, 8)

    def u(kk, shape):
        return jax.random.uniform(kk, shape, jnp.float32, -k, k)

    # PyTorch shapes: weight_ih (4H, 3H), weight_hh (4H, H), biases (4H,)
    w_ih_f = u(keys[0], (4 * H, 3 * H))
    w_hh_f = u(keys[1], (4 * H, H))
    b_ih_f = u(keys[2], (4 * H,))
    b_hh_f = u(keys[3], (4 * H,))
    w_ih_b = u(keys[4], (4 * H, 3 * H))
    w_hh_b = u(keys[5], (4 * H, H))
    b_ih_b = u(keys[6], (4 * H,))
    b_hh_b = u(keys[7], (4 * H,))

    return {
        "wih": jnp.stack([w_ih_f.T, w_ih_b.T]),                       # (2, 3H, 4H)
        "whh": jnp.stack([w_hh_f.T, w_hh_b.T]),                       # (2, H, 4H)
        "b": jnp.stack([(b_ih_f + b_hh_f)[None, :],
                        (b_ih_b + b_hh_b)[None, :]]),                 # (2, 1, 4H)
    }


# ---------------------------------------------------------------------------
# Pure-JAX reference (correctness check)
# ---------------------------------------------------------------------------
def _lstm_dir_ref(x, wih, whh, b, reverse):
    B, T, _ = x.shape
    H = whh.shape[0]
    xs = x[:, ::-1, :] if reverse else x

    def step(carry, x_t):
        h, c = carry
        gates = x_t @ wih + h @ whh + b
        i = jax.nn.sigmoid(gates[:, :H])
        f = jax.nn.sigmoid(gates[:, H:2 * H])
        g = jnp.tanh(gates[:, 2 * H:3 * H])
        o = jax.nn.sigmoid(gates[:, 3 * H:])
        c = f * c + i * g
        h = o * jnp.tanh(c)
        return (h, c), h

    init = (jnp.zeros((B, H), jnp.float32), jnp.zeros((B, H), jnp.float32))
    _, hs = lax.scan(step, init, jnp.swapaxes(xs, 0, 1))
    hs = jnp.swapaxes(hs, 0, 1)                  # (B, T, H)
    return hs[:, ::-1, :] if reverse else hs


def bilstm_encoder_ref(x, params):
    fwd = _lstm_dir_ref(x, params["wih"][0], params["whh"][0], params["b"][0], False)
    bwd = _lstm_dir_ref(x, params["wih"][1], params["whh"][1], params["b"][1], True)
    lstm_out = jnp.concatenate([fwd, bwd], axis=-1)
    return jnp.transpose(lstm_out, (0, 2, 1))[:, :, 1:]


if __name__ == "__main__":
    batch = 2
    seq = 8
    hidden_dim = 32
    embedding_dim = 3 * hidden_dim  # LSTM input size is 3 * hidden_dim

    key = jax.random.PRNGKey(0)
    k_x, k_p = jax.random.split(key)
    x = jax.random.normal(k_x, (batch, seq, embedding_dim), jnp.float32)
    params = init_params(k_p, hidden_dim)

    u = jax.block_until_ready(bilstm_encoder_forward(x, params))
    assert u.shape == (batch, 2 * hidden_dim, seq - 1), u.shape

    u_ref = jax.block_until_ready(bilstm_encoder_ref(x, params))
    # Tolerance covers bf16 MXU inputs on the hoisted projection and the
    # approx-reciprocal sigmoid; structural bugs would be orders larger.
    assert jnp.allclose(u, u_ref, rtol=2e-2, atol=2e-2), float(jnp.max(jnp.abs(u - u_ref)))

    print("KERNEL_OK")
</pallas_src>

<mosaic_0001>
module attributes {stable_mosaic.version = 11 : i64} {
  func.func @_bilstm_kernel(%arg0: i32, %arg1: memref<8x8x96xbf16, #tpu.memory_space<vmem>>, %arg2: memref<96x256xbf16, #tpu.memory_space<vmem>>, %arg3: memref<2x32x128xf32, #tpu.memory_space<vmem>>, %arg4: memref<1x256xf32, #tpu.memory_space<vmem>>, %arg5: memref<16x8x32xf32, #tpu.memory_space<vmem>>, %arg6: memref<8x8x128xf32, #tpu.memory_space<vmem>>, %arg7: memref<8x8x128xf32, #tpu.memory_space<vmem>>) attributes {dimension_semantics = [#tpu.dimension_semantics<parallel>], iteration_bounds = array<i64: 1>, scalar_prefetch = 0 : i64, scratch_operands = 2 : i64, tpu.core_type = #tpu.core_type<tc>, window_params = [{transform_indices = @transform_0, window_bounds = array<i64: 8, 8, 96>}, {pipeline_mode = #tpu.pipeline_mode<synchronous>, transform_indices = @transform_1, window_bounds = array<i64: 96, 256>}, {pipeline_mode = #tpu.pipeline_mode<synchronous>, transform_indices = @transform_2, window_bounds = array<i64: 2, 32, 128>}, {pipeline_mode = #tpu.pipeline_mode<synchronous>, transform_indices = @transform_3, window_bounds = array<i64: 1, 256>}, {transform_indices = @transform_4, window_bounds = array<i64: 16, 8, 32>}]} {
    %c0 = arith.constant 0 : index
    %c0_0 = arith.constant 0 : index
    %c0_1 = arith.constant 0 : index
    %0 = vector.load %arg1[%c0, %c0_0, %c0_1] : memref<8x8x96xbf16, #tpu.memory_space<vmem>>, vector<8x8x96xbf16>
    %1 = vector.shape_cast %0 : vector<8x8x96xbf16> to vector<64x96xbf16>
    %c0_2 = arith.constant 0 : index
    %c0_3 = arith.constant 0 : index
    %2 = vector.load %arg2[%c0_2, %c0_3] : memref<96x256xbf16, #tpu.memory_space<vmem>>, vector<96x256xbf16>
    %cst = arith.constant dense<0.000000e+00> : vector<64x256xf32>
    %3 = tpu.matmul %1, %2, %cst {dimension_numbers = #tpu.dot_dimension_numbers<[1], [0], [0], [1], [0, 0, 1, 1], [], []>} : vector<64x96xbf16>, vector<96x256xbf16>, vector<64x256xf32> -> vector<64x256xf32>
    %c0_4 = arith.constant 0 : index
    %c0_5 = arith.constant 0 : index
    %4 = vector.load %arg4[%c0_4, %c0_5] : memref<1x256xf32, #tpu.memory_space<vmem>>, vector<1x256xf32>
    %5 = vector.broadcast %4 : vector<1x256xf32> to vector<64x256xf32>
    %6 = arith.addf %3, %5 : vector<64x256xf32>
    %7 = vector.shape_cast %6 : vector<64x256xf32> to vector<8x8x256xf32>
    %8 = vector.extract_strided_slice %7 {offsets = [0, 0, 0], sizes = [8, 8, 128], strides = [1, 1, 1]} : vector<8x8x256xf32> to vector<8x8x128xf32>
    %c0_6 = arith.constant 0 : index
    %c0_7 = arith.constant 0 : index
    %c0_8 = arith.constant 0 : index
    %9 = vector.load %arg6[%c0_6, %c0_7, %c0_8] : memref<8x8x128xf32, #tpu.memory_space<vmem>>, vector<8x8x128xf32>
    tpu.vector_store %arg6[%c0_6, %c0_7, %c0_8], %8 {strides = array<i32>} : memref<8x8x128xf32, #tpu.memory_space<vmem>>, vector<8x8x128xf32>,
    %10 = vector.extract_strided_slice %7 {offsets = [0, 0, 128], sizes = [8, 8, 128], strides = [1, 1, 1]} : vector<8x8x256xf32> to vector<8x8x128xf32>
    %c0_9 = arith.constant 0 : index
    %c0_10 = arith.constant 0 : index
    %c0_11 = arith.constant 0 : index
    %11 = vector.load %arg7[%c0_9, %c0_10, %c0_11] : memref<8x8x128xf32, #tpu.memory_space<vmem>>, vector<8x8x128xf32>
    tpu.vector_store %arg7[%c0_9, %c0_10, %c0_11], %10 {strides = array<i32>} : memref<8x8x128xf32, #tpu.memory_space<vmem>>, vector<8x8x128xf32>,
    %c0_12 = arith.constant 0 : index
    %c0_13 = arith.constant 0 : index
    %c0_14 = arith.constant 0 : index
    %12 = vector.load %arg3[%c0_12, %c0_13, %c0_14] : memref<2x32x128xf32, #tpu.memory_space<vmem>>, vector<1x32x128xf32>
    %13 = vector.shape_cast %12 : vector<1x32x128xf32> to vector<32x128xf32>
    %c1 = arith.constant 1 : index
    %c0_15 = arith.constant 0 : index
    %c0_16 = arith.constant 0 : index
    %14 = vector.load %arg3[%c1, %c0_15, %c0_16] : memref<2x32x128xf32, #tpu.memory_space<vmem>>, vector<1x32x128xf32>
    %15 = vector.shape_cast %14 : vector<1x32x128xf32> to vector<32x128xf32>
    %cst_17 = arith.constant 0.000000e+00 : f32
    %16 = vector.broadcast %cst_17 : f32 to vector<8x32xf32>
    %c0_i32 = arith.constant 0 : i32
    %c7_i32 = arith.constant 7 : i32
    %17 = arith.subi %c7_i32, %c0_i32 : i32
    %18 = arith.index_cast %c0_i32 : i32 to index
    %c0_18 = arith.constant 0 : index
    %c0_19 = arith.constant 0 : index
    %19 = vector.load %arg6[%18, %c0_18, %c0_19] : memref<8x8x128xf32, #tpu.memory_space<vmem>>, vector<1x8x128xf32>
    %20 = vector.shape_cast %19 : vector<1x8x128xf32> to vector<8x128xf32>
    %cst_20 = arith.constant dense<0.000000e+00> : vector<8x128xf32>
    %21 = tpu.matmul %16, %13, %cst_20 {dimension_numbers = #tpu.dot_dimension_numbers<[1], [0], [0], [1], [0, 0, 1, 1], [], []>} : vector<8x32xf32>, vector<32x128xf32>, vector<8x128xf32> -> vector<8x128xf32>
    %22 = arith.addf %20, %21 : vector<8x128xf32>
    %23 = arith.index_cast %17 : i32 to index
    %c0_21 = arith.constant 0 : index
    %c0_22 = arith.constant 0 : index
    %24 = vector.load %arg7[%23, %c0_21, %c0_22] : memref<8x8x128xf32, #tpu.memory_space<vmem>>, vector<1x8x128xf32>
    %25 = vector.shape_cast %24 : vector<1x8x128xf32> to vector<8x128xf32>
    %cst_23 = arith.constant dense<0.000000e+00> : vector<8x128xf32>
    %26 = tpu.matmul %16, %15, %cst_23 {dimension_numbers = #tpu.dot_dimension_numbers<[1], [0], [0], [1], [0, 0, 1, 1], [], []>} : vector<8x32xf32>, vector<32x128xf32>, vector<8x128xf32> -> vector<8x128xf32>
    %27 = arith.addf %25, %26 : vector<8x128xf32>
    %cst_24 = arith.constant 0.000000e+00 : f32
    %28 = vector.broadcast %cst_24 : f32 to vector<8x128xf32>
    %29 = arith.subf %28, %22 : vector<8x128xf32>
    %30 = math.exp %29 : vector<8x128xf32>
    %cst_25 = arith.constant 1.000000e+00 : f32
    %31 = vector.broadcast %cst_25 : f32 to vector<8x128xf32>
    %32 = arith.addf %31, %30 : vector<8x128xf32>
    %33 = tpu.reciprocal %32 {approx = true} : vector<8x128xf32> -> vector<8x128xf32>
    %34 = math.tanh %22 : vector<8x128xf32>
    %35 = vector.extract_strided_slice %33 {offsets = [0, 0], sizes = [8, 32], strides = [1, 1]} : vector<8x128xf32> to vector<8x32xf32>
    %36 = vector.extract_strided_slice %33 {offsets = [0, 32], sizes = [8, 32], strides = [1, 1]} : vector<8x128xf32> to vector<8x32xf32>
    %37 = vector.extract_strided_slice %33 {offsets = [0, 96], sizes = [8, 32], strides = [1, 1]} : vector<8x128xf32> to vector<8x32xf32>
    %38 = vector.extract_strided_slice %34 {offsets = [0, 64], sizes = [8, 32], strides = [1, 1]} : vector<8x128xf32> to vector<8x32xf32>
    %39 = arith.mulf %36, %16 : vector<8x32xf32>
    %40 = arith.mulf %35, %38 : vector<8x32xf32>
    %41 = arith.addf %39, %40 : vector<8x32xf32>
    %42 = math.tanh %41 : vector<8x32xf32>
    %43 = arith.mulf %37, %42 : vector<8x32xf32>
    %cst_26 = arith.constant 0.000000e+00 : f32
    %44 = vector.broadcast %cst_26 : f32 to vector<8x128xf32>
    %45 = arith.subf %44, %27 : vector<8x128xf32>
    %46 = math.exp %45 : vector<8x128xf32>
    %cst_27 = arith.constant 1.000000e+00 : f32
    %47 = vector.broadcast %cst_27 : f32 to vector<8x128xf32>
    %48 = arith.addf %47, %46 : vector<8x128xf32>
    %49 = tpu.reciprocal %48 {approx = true} : vector<8x128xf32> -> vector<8x128xf32>
    %50 = math.tanh %27 : vector<8x128xf32>
    %51 = vector.extract_strided_slice %49 {offsets = [0, 0], sizes = [8, 32], strides = [1, 1]} : vector<8x128xf32> to vector<8x32xf32>
    %52 = vector.extract_strided_slice %49 {offsets = [0, 32], sizes = [8, 32], strides = [1, 1]} : vector<8x128xf32> to vector<8x32xf32>
    %53 = vector.extract_strided_slice %49 {offsets = [0, 96], sizes = [8, 32], strides = [1, 1]} : vector<8x128xf32> to vector<8x32xf32>
    %54 = vector.extract_strided_slice %50 {offsets = [0, 64], sizes = [8, 32], strides = [1, 1]} : vector<8x128xf32> to vector<8x32xf32>
    %55 = arith.mulf %52, %16 : vector<8x32xf32>
    %56 = arith.mulf %51, %54 : vector<8x32xf32>
    %57 = arith.addf %55, %56 : vector<8x32xf32>
    %58 = math.tanh %57 : vector<8x32xf32>
    %59 = arith.mulf %53, %58 : vector<8x32xf32>
    %60 = arith.index_cast %c0_i32 : i32 to index
    %c0_28 = arith.constant 0 : index
    %c0_29 = arith.constant 0 : index
    %61 = vector.load %arg5[%60, %c0_28, %c0_29] : memref<16x8x32xf32, #tpu.memory_space<vmem>>, vector<1x8x32xf32>
    %62 = vector.shape_cast %61 : vector<1x8x32xf32> to vector<8x32xf32>
    %63 = vector.shape_cast %43 : vector<8x32xf32> to vector<1x8x32xf32>
    tpu.vector_store %arg5[%60, %c0_28, %c0_29], %63 {strides = array<i32>} : memref<16x8x32xf32, #tpu.memory_space<vmem>>, vector<1x8x32xf32>,
    %c8_i32 = arith.constant 8 : i32
    %64 = arith.addi %c8_i32, %17 : i32
    %65 = arith.index_cast %64 : i32 to index
    %c0_30 = arith.constant 0 : index
    %c0_31 = arith.constant 0 : index
    %66 = vector.load %arg5[%65, %c0_30, %c0_31] : memref<16x8x32xf32, #tpu.memory_space<vmem>>, vector<1x8x32xf32>
    %67 = vector.shape_cast %66 : vector<1x8x32xf32> to vector<8x32xf32>
    %68 = vector.shape_cast %59 : vector<8x32xf32> to vector<1x8x32xf32>
    tpu.vector_store %arg5[%65, %c0_30, %c0_31], %68 {strides = array<i32>} : memref<16x8x32xf32, #tpu.memory_space<vmem>>, vector<1x8x32xf32>,
    %c1_i32 = arith.constant 1 : i32
    %c7_i32_32 = arith.constant 7 : i32
    %69 = arith.subi %c7_i32_32, %c1_i32 : i32
    %70 = arith.index_cast %c1_i32 : i32 to index
    %c0_33 = arith.constant 0 : index
    %c0_34 = arith.constant 0 : index
    %71 = vector.load %arg6[%70, %c0_33, %c0_34] : memref<8x8x128xf32, #tpu.memory_space<vmem>>, vector<1x8x128xf32>
    %72 = vector.shape_cast %71 : vector<1x8x128xf32> to vector<8x128xf32>
    %cst_35 = arith.constant dense<0.000000e+00> : vector<8x128xf32>
    %73 = tpu.matmul %43, %13, %cst_35 {dimension_numbers = #tpu.dot_dimension_numbers<[1], [0], [0], [1], [0, 0, 1, 1], [], []>} : vector<8x32xf32>, vector<32x128xf32>, vector<8x128xf32> -> vector<8x128xf32>
    %74 = arith.addf %72, %73 : vector<8x128xf32>
    %75 = arith.index_cast %69 : i32 to index
    %c0_36 = arith.constant 0 : index
    %c0_37 = arith.constant 0 : index
    %76 = vector.load %arg7[%75, %c0_36, %c0_37] : memref<8x8x128xf32, #tpu.memory_space<vmem>>, vector<1x8x128xf32>
    %77 = vector.shape_cast %76 : vector<1x8x128xf32> to vector<8x128xf32>
    %cst_38 = arith.constant dense<0.000000e+00> : vector<8x128xf32>
    %78 = tpu.matmul %59, %15, %cst_38 {dimension_numbers = #tpu.dot_dimension_numbers<[1], [0], [0], [1], [0, 0, 1, 1], [], []>} : vector<8x32xf32>, vector<32x128xf32>, vector<8x128xf32> -> vector<8x128xf32>
    %79 = arith.addf %77, %78 : vector<8x128xf32>
    %cst_39 = arith.constant 0.000000e+00 : f32
    %80 = vector.broadcast %cst_39 : f32 to vector<8x128xf32>
    %81 = arith.subf %80, %74 : vector<8x128xf32>
    %82 = math.exp %81 : vector<8x128xf32>
    %cst_40 = arith.constant 1.000000e+00 : f32
    %83 = vector.broadcast %cst_40 : f32 to vector<8x128xf32>
    %84 = arith.addf %83, %82 : vector<8x128xf32>
    %85 = tpu.reciprocal %84 {approx = true} : vector<8x128xf32> -> vector<8x128xf32>
    %86 = math.tanh %74 : vector<8x128xf32>
    %87 = vector.extract_strided_slice %85 {offsets = [0, 0], sizes = [8, 32], strides = [1, 1]} : vector<8x128xf32> to vector<8x32xf32>
    %88 = vector.extract_strided_slice %85 {offsets = [0, 32], sizes = [8, 32], strides = [1, 1]} : vector<8x128xf32> to vector<8x32xf32>
    %89 = vector.extract_strided_slice %85 {offsets = [0, 96], sizes = [8, 32], strides = [1, 1]} : vector<8x128xf32> to vector<8x32xf32>
    %90 = vector.extract_strided_slice %86 {offsets = [0, 64], sizes = [8, 32], strides = [1, 1]} : vector<8x128xf32> to vector<8x32xf32>
    %91 = arith.mulf %88, %41 : vector<8x32xf32>
    %92 = arith.mulf %87, %90 : vector<8x32xf32>
    %93 = arith.addf %91, %92 : vector<8x32xf32>
    %94 = math.tanh %93 : vector<8x32xf32>
    %95 = arith.mulf %89, %94 : vector<8x32xf32>
    %cst_41 = arith.constant 0.000000e+00 : f32
    %96 = vector.broadcast %cst_41 : f32 to vector<8x128xf32>
    %97 = arith.subf %96, %79 : vector<8x128xf32>
    %98 = math.exp %97 : vector<8x128xf32>
    %cst_42 = arith.constant 1.000000e+00 : f32
    %99 = vector.broadcast %cst_42 : f32 to vector<8x128xf32>
    %100 = arith.addf %99, %98 : vector<8x128xf32>
    %101 = tpu.reciprocal %100 {approx = true} : vector<8x128xf32> -> vector<8x128xf32>
    %102 = math.tanh %79 : vector<8x128xf32>
    %103 = vector.extract_strided_slice %101 {offsets = [0, 0], sizes = [8, 32], strides = [1, 1]} : vector<8x128xf32> to vector<8x32xf32>
    %104 = vector.extract_strided_slice %101 {offsets = [0, 32], sizes = [8, 32], strides = [1, 1]} : vector<8x128xf32> to vector<8x32xf32>
    %105 = vector.extract_strided_slice %101 {offsets = [0, 96], sizes = [8, 32], strides = [1, 1]} : vector<8x128xf32> to vector<8x32xf32>
    %106 = vector.extract_strided_slice %102 {offsets = [0, 64], sizes = [8, 32], strides = [1, 1]} : vector<8x128xf32> to vector<8x32xf32>
    %107 = arith.mulf %104, %57 : vector<8x32xf32>
    %108 = arith.mulf %103, %106 : vector<8x32xf32>
    %109 = arith.addf %107, %108 : vector<8x32xf32>
    %110 = math.tanh %109 : vector<8x32xf32>
    %111 = arith.mulf %105, %110 : vector<8x32xf32>
    %112 = arith.index_cast %c1_i32 : i32 to index
    %c0_43 = arith.constant 0 : index
    %c0_44 = arith.constant 0 : index
    %113 = vector.load %arg5[%112, %c0_43, %c0_44] : memref<16x8x32xf32, #tpu.memory_space<vmem>>, vector<1x8x32xf32>
    %114 = vector.shape_cast %113 : vector<1x8x32xf32> to vector<8x32xf32>
    %115 = vector.shape_cast %95 : vector<8x32xf32> to vector<1x8x32xf32>
    tpu.vector_store %arg5[%112, %c0_43, %c0_44], %115 {strides = array<i32>} : memref<16x8x32xf32, #tpu.memory_space<vmem>>, vector<1x8x32xf32>,
    %c8_i32_45 = arith.constant 8 : i32
    %116 = arith.addi %c8_i32_45, %69 : i32
    %117 = arith.index_cast %116 : i32 to index
    %c0_46 = arith.constant 0 : index
    %c0_47 = arith.constant 0 : index
    %118 = vector.load %arg5[%117, %c0_46, %c0_47] : memref<16x8x32xf32, #tpu.memory_space<vmem>>, vector<1x8x32xf32>
    %119 = vector.shape_cast %118 : vector<1x8x32xf32> to vector<8x32xf32>
    %120 = vector.shape_cast %111 : vector<8x32xf32> to vector<1x8x32xf32>
    tpu.vector_store %arg5[%117, %c0_46, %c0_47], %120 {strides = array<i32>} : memref<16x8x32xf32, #tpu.memory_space<vmem>>, vector<1x8x32xf32>,
    %c2_i32 = arith.constant 2 : i32
    %c7_i32_48 = arith.constant 7 : i32
    %121 = arith.subi %c7_i32_48, %c2_i32 : i32
    %122 = arith.index_cast %c2_i32 : i32 to index
    %c0_49 = arith.constant 0 : index
    %c0_50 = arith.constant 0 : index
    %123 = vector.load %arg6[%122, %c0_49, %c0_50] : memref<8x8x128xf32, #tpu.memory_space<vmem>>, vector<1x8x128xf32>
    %124 = vector.shape_cast %123 : vector<1x8x128xf32> to vector<8x128xf32>
    %cst_51 = arith.constant dense<0.000000e+00> : vector<8x128xf32>
    %125 = tpu.matmul %95, %13, %cst_51 {dimension_numbers = #tpu.dot_dimension_numbers<[1], [0], [0], [1], [0, 0, 1, 1], [], []>} : vector<8x32xf32>, vector<32x128xf32>, vector<8x128xf32> -> vector<8x128xf32>
    %126 = arith.addf %124, %125 : vector<8x128xf32>
    %127 = arith.index_cast %121 : i32 to index
    %c0_52 = arith.constant 0 : index
    %c0_53 = arith.constant 0 : index
    %128 = vector.load %arg7[%127, %c0_52, %c0_53] : memref<8x8x128xf32, #tpu.memory_space<vmem>>, vector<1x8x128xf32>
    %129 = vector.shape_cast %128 : vector<1x8x128xf32> to vector<8x128xf32>
    %cst_54 = arith.constant dense<0.000000e+00> : vector<8x128xf32>
    %130 = tpu.matmul %111, %15, %cst_54 {dimension_numbers = #tpu.dot_dimension_numbers<[1], [0], [0], [1], [0, 0, 1, 1], [], []>} : vector<8x32xf32>, vector<32x128xf32>, vector<8x128xf32> -> vector<8x128xf32>
    %131 = arith.addf %129, %130 : vector<8x128xf32>
    %cst_55 = arith.constant 0.000000e+00 : f32
    %132 = vector.broadcast %cst_55 : f32 to vector<8x128xf32>
    %133 = arith.subf %132, %126 : vector<8x128xf32>
    %134 = math.exp %133 : vector<8x128xf32>
    %cst_56 = arith.constant 1.000000e+00 : f32
    %135 = vector.broadcast %cst_56 : f32 to vector<8x128xf32>
    %136 = arith.addf %135, %134 : vector<8x128xf32>
    %137 = tpu.reciprocal %136 {approx = true} : vector<8x128xf32> -> vector<8x128xf32>
    %138 = math.tanh %126 : vector<8x128xf32>
    %139 = vector.extract_strided_slice %137 {offsets = [0, 0], sizes = [8, 32], strides = [1, 1]} : vector<8x128xf32> to vector<8x32xf32>
    %140 = vector.extract_strided_slice %137 {offsets = [0, 32], sizes = [8, 32], strides = [1, 1]} : vector<8x128xf32> to vector<8x32xf32>
    %141 = vector.extract_strided_slice %137 {offsets = [0, 96], sizes = [8, 32], strides = [1, 1]} : vector<8x128xf32> to vector<8x32xf32>
    %142 = vector.extract_strided_slice %138 {offsets = [0, 64], sizes = [8, 32], strides = [1, 1]} : vector<8x128xf32> to vector<8x32xf32>
    %143 = arith.mulf %140, %93 : vector<8x32xf32>
    %144 = arith.mulf %139, %142 : vector<8x32xf32>
    %145 = arith.addf %143, %144 : vector<8x32xf32>
    %146 = math.tanh %145 : vector<8x32xf32>
    %147 = arith.mulf %141, %146 : vector<8x32xf32>
    %cst_57 = arith.constant 0.000000e+00 : f32
    %148 = vector.broadcast %cst_57 : f32 to vector<8x128xf32>
    %149 = arith.subf %148, %131 : vector<8x128xf32>
    %150 = math.exp %149 : vector<8x128xf32>
    %cst_58 = arith.constant 1.000000e+00 : f32
    %151 = vector.broadcast %cst_58 : f32 to vector<8x128xf32>
    %152 = arith.addf %151, %150 : vector<8x128xf32>
    %153 = tpu.reciprocal %152 {approx = true} : vector<8x128xf32> -> vector<8x128xf32>
    %154 = math.tanh %131 : vector<8x128xf32>
    %155 = vector.extract_strided_slice %153 {offsets = [0, 0], sizes = [8, 32], strides = [1, 1]} : vector<8x128xf32> to vector<8x32xf32>
    %156 = vector.extract_strided_slice %153 {offsets = [0, 32], sizes = [8, 32], strides = [1, 1]} : vector<8x128xf32> to vector<8x32xf32>
    %157 = vector.extract_strided_slice %153 {offsets = [0, 96], sizes = [8, 32], strides = [1, 1]} : vector<8x128xf32> to vector<8x32xf32>
    %158 = vector.extract_strided_slice %154 {offsets = [0, 64], sizes = [8, 32], strides = [1, 1]} : vector<8x128xf32> to vector<8x32xf32>
    %159 = arith.mulf %156, %109 : vector<8x32xf32>
    %160 = arith.mulf %155, %158 : vector<8x32xf32>
    %161 = arith.addf %159, %160 : vector<8x32xf32>
    %162 = math.tanh %161 : vector<8x32xf32>
    %163 = arith.mulf %157, %162 : vector<8x32xf32>
    %164 = arith.index_cast %c2_i32 : i32 to index
    %c0_59 = arith.constant 0 : index
    %c0_60 = arith.constant 0 : index
    %165 = vector.load %arg5[%164, %c0_59, %c0_60] : memref<16x8x32xf32, #tpu.memory_space<vmem>>, vector<1x8x32xf32>
    %166 = vector.shape_cast %165 : vector<1x8x32xf32> to vector<8x32xf32>
    %167 = vector.shape_cast %147 : vector<8x32xf32> to vector<1x8x32xf32>
    tpu.vector_store %arg5[%164, %c0_59, %c0_60], %167 {strides = array<i32>} : memref<16x8x32xf32, #tpu.memory_space<vmem>>, vector<1x8x32xf32>,
    %c8_i32_61 = arith.constant 8 : i32
    %168 = arith.addi %c8_i32_61, %121 : i32
    %169 = arith.index_cast %168 : i32 to index
    %c0_62 = arith.constant 0 : index
    %c0_63 = arith.constant 0 : index
    %170 = vector.load %arg5[%169, %c0_62, %c0_63] : memref<16x8x32xf32, #tpu.memory_space<vmem>>, vector<1x8x32xf32>
    %171 = vector.shape_cast %170 : vector<1x8x32xf32> to vector<8x32xf32>
    %172 = vector.shape_cast %163 : vector<8x32xf32> to vector<1x8x32xf32>
    tpu.vector_store %arg5[%169, %c0_62, %c0_63], %172 {strides = array<i32>} : memref<16x8x32xf32, #tpu.memory_space<vmem>>, vector<1x8x32xf32>,
    %c3_i32 = arith.constant 3 : i32
    %c7_i32_64 = arith.constant 7 : i32
    %173 = arith.subi %c7_i32_64, %c3_i32 : i32
    %174 = arith.index_cast %c3_i32 : i32 to index
    %c0_65 = arith.constant 0 : index
    %c0_66 = arith.constant 0 : index
    %175 = vector.load %arg6[%174, %c0_65, %c0_66] : memref<8x8x128xf32, #tpu.memory_space<vmem>>, vector<1x8x128xf32>
    %176 = vector.shape_cast %175 : vector<1x8x128xf32> to vector<8x128xf32>
    %cst_67 = arith.constant dense<0.000000e+00> : vector<8x128xf32>
    %177 = tpu.matmul %147, %13, %cst_67 {dimension_numbers = #tpu.dot_dimension_numbers<[1], [0], [0], [1], [0, 0, 1, 1], [], []>} : vector<8x32xf32>, vector<32x128xf32>, vector<8x128xf32> -> vector<8x128xf32>
    %178 = arith.addf %176, %177 : vector<8x128xf32>
    %179 = arith.index_cast %173 : i32 to index
    %c0_68 = arith.constant 0 : index
    %c0_69 = arith.constant 0 : index
    %180 = vector.load %arg7[%179, %c0_68, %c0_69] : memref<8x8x128xf32, #tpu.memory_space<vmem>>, vector<1x8x128xf32>
    %181 = vector.shape_cast %180 : vector<1x8x128xf32> to vector<8x128xf32>
    %cst_70 = arith.constant dense<0.000000e+00> : vector<8x128xf32>
    %182 = tpu.matmul %163, %15, %cst_70 {dimension_numbers = #tpu.dot_dimension_numbers<[1], [0], [0], [1], [0, 0, 1, 1], [], []>} : vector<8x32xf32>, vector<32x128xf32>, vector<8x128xf32> -> vector<8x128xf32>
    %183 = arith.addf %181, %182 : vector<8x128xf32>
    %cst_71 = arith.constant 0.000000e+00 : f32
    %184 = vector.broadcast %cst_71 : f32 to vector<8x128xf32>
    %185 = arith.subf %184, %178 : vector<8x128xf32>
    %186 = math.exp %185 : vector<8x128xf32>
    %cst_72 = arith.constant 1.000000e+00 : f32
    %187 = vector.broadcast %cst_72 : f32 to vector<8x128xf32>
    %188 = arith.addf %187, %186 : vector<8x128xf32>
    %189 = tpu.reciprocal %188 {approx = true} : vector<8x128xf32> -> vector<8x128xf32>
    %190 = math.tanh %178 : vector<8x128xf32>
    %191 = vector.extract_strided_slice %189 {offsets = [0, 0], sizes = [8, 32], strides = [1, 1]} : vector<8x128xf32> to vector<8x32xf32>
    %192 = vector.extract_strided_slice %189 {offsets = [0, 32], sizes = [8, 32], strides = [1, 1]} : vector<8x128xf32> to vector<8x32xf32>
    %193 = vector.extract_strided_slice %189 {offsets = [0, 96], sizes = [8, 32], strides = [1, 1]} : vector<8x128xf32> to vector<8x32xf32>
    %194 = vector.extract_strided_slice %190 {offsets = [0, 64], sizes = [8, 32], strides = [1, 1]} : vector<8x128xf32> to vector<8x32xf32>
    %195 = arith.mulf %192, %145 : vector<8x32xf32>
    %196 = arith.mulf %191, %194 : vector<8x32xf32>
    %197 = arith.addf %195, %196 : vector<8x32xf32>
    %198 = math.tanh %197 : vector<8x32xf32>
    %199 = arith.mulf %193, %198 : vector<8x32xf32>
    %cst_73 = arith.constant 0.000000e+00 : f32
    %200 = vector.broadcast %cst_73 : f32 to vector<8x128xf32>
    %201 = arith.subf %200, %183 : vector<8x128xf32>
    %202 = math.exp %201 : vector<8x128xf32>
    %cst_74 = arith.constant 1.000000e+00 : f32
    %203 = vector.broadcast %cst_74 : f32 to vector<8x128xf32>
    %204 = arith.addf %203, %202 : vector<8x128xf32>
    %205 = tpu.reciprocal %204 {approx = true} : vector<8x128xf32> -> vector<8x128xf32>
    %206 = math.tanh %183 : vector<8x128xf32>
    %207 = vector.extract_strided_slice %205 {offsets = [0, 0], sizes = [8, 32], strides = [1, 1]} : vector<8x128xf32> to vector<8x32xf32>
    %208 = vector.extract_strided_slice %205 {offsets = [0, 32], sizes = [8, 32], strides = [1, 1]} : vector<8x128xf32> to vector<8x32xf32>
    %209 = vector.extract_strided_slice %205 {offsets = [0, 96], sizes = [8, 32], strides = [1, 1]} : vector<8x128xf32> to vector<8x32xf32>
    %210 = vector.extract_strided_slice %206 {offsets = [0, 64], sizes = [8, 32], strides = [1, 1]} : vector<8x128xf32> to vector<8x32xf32>
    %211 = arith.mulf %208, %161 : vector<8x32xf32>
    %212 = arith.mulf %207, %210 : vector<8x32xf32>
    %213 = arith.addf %211, %212 : vector<8x32xf32>
    %214 = math.tanh %213 : vector<8x32xf32>
    %215 = arith.mulf %209, %214 : vector<8x32xf32>
    %216 = arith.index_cast %c3_i32 : i32 to index
    %c0_75 = arith.constant 0 : index
    %c0_76 = arith.constant 0 : index
    %217 = vector.load %arg5[%216, %c0_75, %c0_76] : memref<16x8x32xf32, #tpu.memory_space<vmem>>, vector<1x8x32xf32>
    %218 = vector.shape_cast %217 : vector<1x8x32xf32> to vector<8x32xf32>
    %219 = vector.shape_cast %199 : vector<8x32xf32> to vector<1x8x32xf32>
    tpu.vector_store %arg5[%216, %c0_75, %c0_76], %219 {strides = array<i32>} : memref<16x8x32xf32, #tpu.memory_space<vmem>>, vector<1x8x32xf32>,
    %c8_i32_77 = arith.constant 8 : i32
    %220 = arith.addi %c8_i32_77, %173 : i32
    %221 = arith.index_cast %220 : i32 to index
    %c0_78 = arith.constant 0 : index
    %c0_79 = arith.constant 0 : index
    %222 = vector.load %arg5[%221, %c0_78, %c0_79] : memref<16x8x32xf32, #tpu.memory_space<vmem>>, vector<1x8x32xf32>
    %223 = vector.shape_cast %222 : vector<1x8x32xf32> to vector<8x32xf32>
    %224 = vector.shape_cast %215 : vector<8x32xf32> to vector<1x8x32xf32>
    tpu.vector_store %arg5[%221, %c0_78, %c0_79], %224 {strides = array<i32>} : memref<16x8x32xf32, #tpu.memory_space<vmem>>, vector<1x8x32xf32>,
    %c4_i32 = arith.constant 4 : i32
    %c7_i32_80 = arith.constant 7 : i32
    %225 = arith.subi %c7_i32_80, %c4_i32 : i32
    %226 = arith.index_cast %c4_i32 : i32 to index
    %c0_81 = arith.constant 0 : index
    %c0_82 = arith.constant 0 : index
    %227 = vector.load %arg6[%226, %c0_81, %c0_82] : memref<8x8x128xf32, #tpu.memory_space<vmem>>, vector<1x8x128xf32>
    %228 = vector.shape_cast %227 : vector<1x8x128xf32> to vector<8x128xf32>
    %cst_83 = arith.constant dense<0.000000e+00> : vector<8x128xf32>
    %229 = tpu.matmul %199, %13, %cst_83 {dimension_numbers = #tpu.dot_dimension_numbers<[1], [0], [0], [1], [0, 0, 1, 1], [], []>} : vector<8x32xf32>, vector<32x128xf32>, vector<8x128xf32> -> vector<8x128xf32>
    %230 = arith.addf %228, %229 : vector<8x128xf32>
    %231 = arith.index_cast %225 : i32 to index
    %c0_84 = arith.constant 0 : index
    %c0_85 = arith.constant 0 : index
    %232 = vector.load %arg7[%231, %c0_84, %c0_85] : memref<8x8x128xf32, #tpu.memory_space<vmem>>, vector<1x8x128xf32>
    %233 = vector.shape_cast %232 : vector<1x8x128xf32> to vector<8x128xf32>
    %cst_86 = arith.constant dense<0.000000e+00> : vector<8x128xf32>
    %234 = tpu.matmul %215, %15, %cst_86 {dimension_numbers = #tpu.dot_dimension_numbers<[1], [0], [0], [1], [0, 0, 1, 1], [], []>} : vector<8x32xf32>, vector<32x128xf32>, vector<8x128xf32> -> vector<8x128xf32>
    %235 = arith.addf %233, %234 : vector<8x128xf32>
    %cst_87 = arith.constant 0.000000e+00 : f32
    %236 = vector.broadcast %cst_87 : f32 to vector<8x128xf32>
    %237 = arith.subf %236, %230 : vector<8x128xf32>
    %238 = math.exp %237 : vector<8x128xf32>
    %cst_88 = arith.constant 1.000000e+00 : f32
    %239 = vector.broadcast %cst_88 : f32 to vector<8x128xf32>
    %240 = arith.addf %239, %238 : vector<8x128xf32>
    %241 = tpu.reciprocal %240 {approx = true} : vector<8x128xf32> -> vector<8x128xf32>
    %242 = math.tanh %230 : vector<8x128xf32>
    %243 = vector.extract_strided_slice %241 {offsets = [0, 0], sizes = [8, 32], strides = [1, 1]} : vector<8x128xf32> to vector<8x32xf32>
    %244 = vector.extract_strided_slice %241 {offsets = [0, 32], sizes = [8, 32], strides = [1, 1]} : vector<8x128xf32> to vector<8x32xf32>
    %245 = vector.extract_strided_slice %241 {offsets = [0, 96], sizes = [8, 32], strides = [1, 1]} : vector<8x128xf32> to vector<8x32xf32>
    %246 = vector.extract_strided_slice %242 {offsets = [0, 64], sizes = [8, 32], strides = [1, 1]} : vector<8x128xf32> to vector<8x32xf32>
    %247 = arith.mulf %244, %197 : vector<8x32xf32>
    %248 = arith.mulf %243, %246 : vector<8x32xf32>
    %249 = arith.addf %247, %248 : vector<8x32xf32>
    %250 = math.tanh %249 : vector<8x32xf32>
    %251 = arith.mulf %245, %250 : vector<8x32xf32>
    %cst_89 = arith.constant 0.000000e+00 : f32
    %252 = vector.broadcast %cst_89 : f32 to vector<8x128xf32>
    %253 = arith.subf %252, %235 : vector<8x128xf32>
    %254 = math.exp %253 : vector<8x128xf32>
    %cst_90 = arith.constant 1.000000e+00 : f32
    %255 = vector.broadcast %cst_90 : f32 to vector<8x128xf32>
    %256 = arith.addf %255, %254 : vector<8x128xf32>
    %257 = tpu.reciprocal %256 {approx = true} : vector<8x128xf32> -> vector<8x128xf32>
    %258 = math.tanh %235 : vector<8x128xf32>
    %259 = vector.extract_strided_slice %257 {offsets = [0, 0], sizes = [8, 32], strides = [1, 1]} : vector<8x128xf32> to vector<8x32xf32>
    %260 = vector.extract_strided_slice %257 {offsets = [0, 32], sizes = [8, 32], strides = [1, 1]} : vector<8x128xf32> to vector<8x32xf32>
    %261 = vector.extract_strided_slice %257 {offsets = [0, 96], sizes = [8, 32], strides = [1, 1]} : vector<8x128xf32> to vector<8x32xf32>
    %262 = vector.extract_strided_slice %258 {offsets = [0, 64], sizes = [8, 32], strides = [1, 1]} : vector<8x128xf32> to vector<8x32xf32>
    %263 = arith.mulf %260, %213 : vector<8x32xf32>
    %264 = arith.mulf %259, %262 : vector<8x32xf32>
    %265 = arith.addf %263, %264 : vector<8x32xf32>
    %266 = math.tanh %265 : vector<8x32xf32>
    %267 = arith.mulf %261, %266 : vector<8x32xf32>
    %268 = arith.index_cast %c4_i32 : i32 to index
    %c0_91 = arith.constant 0 : index
    %c0_92 = arith.constant 0 : index
    %269 = vector.load %arg5[%268, %c0_91, %c0_92] : memref<16x8x32xf32, #tpu.memory_space<vmem>>, vector<1x8x32xf32>
    %270 = vector.shape_cast %269 : vector<1x8x32xf32> to vector<8x32xf32>
    %271 = vector.shape_cast %251 : vector<8x32xf32> to vector<1x8x32xf32>
    tpu.vector_store %arg5[%268, %c0_91, %c0_92], %271 {strides = array<i32>} : memref<16x8x32xf32, #tpu.memory_space<vmem>>, vector<1x8x32xf32>,
    %c8_i32_93 = arith.constant 8 : i32
    %272 = arith.addi %c8_i32_93, %225 : i32
    %273 = arith.index_cast %272 : i32 to index
    %c0_94 = arith.constant 0 : index
    %c0_95 = arith.constant 0 : index
    %274 = vector.load %arg5[%273, %c0_94, %c0_95] : memref<16x8x32xf32, #tpu.memory_space<vmem>>, vector<1x8x32xf32>
    %275 = vector.shape_cast %274 : vector<1x8x32xf32> to vector<8x32xf32>
    %276 = vector.shape_cast %267 : vector<8x32xf32> to vector<1x8x32xf32>
    tpu.vector_store %arg5[%273, %c0_94, %c0_95], %276 {strides = array<i32>} : memref<16x8x32xf32, #tpu.memory_space<vmem>>, vector<1x8x32xf32>,
    %c5_i32 = arith.constant 5 : i32
    %c7_i32_96 = arith.constant 7 : i32
    %277 = arith.subi %c7_i32_96, %c5_i32 : i32
    %278 = arith.index_cast %c5_i32 : i32 to index
    %c0_97 = arith.constant 0 : index
    %c0_98 = arith.constant 0 : index
    %279 = vector.load %arg6[%278, %c0_97, %c0_98] : memref<8x8x128xf32, #tpu.memory_space<vmem>>, vector<1x8x128xf32>
    %280 = vector.shape_cast %279 : vector<1x8x128xf32> to vector<8x128xf32>
    %cst_99 = arith.constant dense<0.000000e+00> : vector<8x128xf32>
    %281 = tpu.matmul %251, %13, %cst_99 {dimension_numbers = #tpu.dot_dimension_numbers<[1], [0], [0], [1], [0, 0, 1, 1], [], []>} : vector<8x32xf32>, vector<32x128xf32>, vector<8x128xf32> -> vector<8x128xf32>
    %282 = arith.addf %280, %281 : vector<8x128xf32>
    %283 = arith.index_cast %277 : i32 to index
    %c0_100 = arith.constant 0 : index
    %c0_101 = arith.constant 0 : index
    %284 = vector.load %arg7[%283, %c0_100, %c0_101] : memref<8x8x128xf32, #tpu.memory_space<vmem>>, vector<1x8x128xf32>
    %285 = vector.shape_cast %284 : vector<1x8x128xf32> to vector<8x128xf32>
    %cst_102 = arith.constant dense<0.000000e+00> : vector<8x128xf32>
    %286 = tpu.matmul %267, %15, %cst_102 {dimension_numbers = #tpu.dot_dimension_numbers<[1], [0], [0], [1], [0, 0, 1, 1], [], []>} : vector<8x32xf32>, vector<32x128xf32>, vector<8x128xf32> -> vector<8x128xf32>
    %287 = arith.addf %285, %286 : vector<8x128xf32>
    %cst_103 = arith.constant 0.000000e+00 : f32
    %288 = vector.broadcast %cst_103 : f32 to vector<8x128xf32>
    %289 = arith.subf %288, %282 : vector<8x128xf32>
    %290 = math.exp %289 : vector<8x128xf32>
    %cst_104 = arith.constant 1.000000e+00 : f32
    %291 = vector.broadcast %cst_104 : f32 to vector<8x128xf32>
    %292 = arith.addf %291, %290 : vector<8x128xf32>
    %293 = tpu.reciprocal %292 {approx = true} : vector<8x128xf32> -> vector<8x128xf32>
    %294 = math.tanh %282 : vector<8x128xf32>
    %295 = vector.extract_strided_slice %293 {offsets = [0, 0], sizes = [8, 32], strides = [1, 1]} : vector<8x128xf32> to vector<8x32xf32>
    %296 = vector.extract_strided_slice %293 {offsets = [0, 32], sizes = [8, 32], strides = [1, 1]} : vector<8x128xf32> to vector<8x32xf32>
    %297 = vector.extract_strided_slice %293 {offsets = [0, 96], sizes = [8, 32], strides = [1, 1]} : vector<8x128xf32> to vector<8x32xf32>
    %298 = vector.extract_strided_slice %294 {offsets = [0, 64], sizes = [8, 32], strides = [1, 1]} : vector<8x128xf32> to vector<8x32xf32>
    %299 = arith.mulf %296, %249 : vector<8x32xf32>
    %300 = arith.mulf %295, %298 : vector<8x32xf32>
    %301 = arith.addf %299, %300 : vector<8x32xf32>
    %302 = math.tanh %301 : vector<8x32xf32>
    %303 = arith.mulf %297, %302 : vector<8x32xf32>
    %cst_105 = arith.constant 0.000000e+00 : f32
    %304 = vector.broadcast %cst_105 : f32 to vector<8x128xf32>
    %305 = arith.subf %304, %287 : vector<8x128xf32>
    %306 = math.exp %305 : vector<8x128xf32>
    %cst_106 = arith.constant 1.000000e+00 : f32
    %307 = vector.broadcast %cst_106 : f32 to vector<8x128xf32>
    %308 = arith.addf %307, %306 : vector<8x128xf32>
    %309 = tpu.reciprocal %308 {approx = true} : vector<8x128xf32> -> vector<8x128xf32>
    %310 = math.tanh %287 : vector<8x128xf32>
    %311 = vector.extract_strided_slice %309 {offsets = [0, 0], sizes = [8, 32], strides = [1, 1]} : vector<8x128xf32> to vector<8x32xf32>
    %312 = vector.extract_strided_slice %309 {offsets = [0, 32], sizes = [8, 32], strides = [1, 1]} : vector<8x128xf32> to vector<8x32xf32>
    %313 = vector.extract_strided_slice %309 {offsets = [0, 96], sizes = [8, 32], strides = [1, 1]} : vector<8x128xf32> to vector<8x32xf32>
    %314 = vector.extract_strided_slice %310 {offsets = [0, 64], sizes = [8, 32], strides = [1, 1]} : vector<8x128xf32> to vector<8x32xf32>
    %315 = arith.mulf %312, %265 : vector<8x32xf32>
    %316 = arith.mulf %311, %314 : vector<8x32xf32>
    %317 = arith.addf %315, %316 : vector<8x32xf32>
    %318 = math.tanh %317 : vector<8x32xf32>
    %319 = arith.mulf %313, %318 : vector<8x32xf32>
    %320 = arith.index_cast %c5_i32 : i32 to index
    %c0_107 = arith.constant 0 : index
    %c0_108 = arith.constant 0 : index
    %321 = vector.load %arg5[%320, %c0_107, %c0_108] : memref<16x8x32xf32, #tpu.memory_space<vmem>>, vector<1x8x32xf32>
    %322 = vector.shape_cast %321 : vector<1x8x32xf32> to vector<8x32xf32>
    %323 = vector.shape_cast %303 : vector<8x32xf32> to vector<1x8x32xf32>
    tpu.vector_store %arg5[%320, %c0_107, %c0_108], %323 {strides = array<i32>} : memref<16x8x32xf32, #tpu.memory_space<vmem>>, vector<1x8x32xf32>,
    %c8_i32_109 = arith.constant 8 : i32
    %324 = arith.addi %c8_i32_109, %277 : i32
    %325 = arith.index_cast %324 : i32 to index
    %c0_110 = arith.constant 0 : index
    %c0_111 = arith.constant 0 : index
    %326 = vector.load %arg5[%325, %c0_110, %c0_111] : memref<16x8x32xf32, #tpu.memory_space<vmem>>, vector<1x8x32xf32>
    %327 = vector.shape_cast %326 : vector<1x8x32xf32> to vector<8x32xf32>
    %328 = vector.shape_cast %319 : vector<8x32xf32> to vector<1x8x32xf32>
    tpu.vector_store %arg5[%325, %c0_110, %c0_111], %328 {strides = array<i32>} : memref<16x8x32xf32, #tpu.memory_space<vmem>>, vector<1x8x32xf32>,
    %c6_i32 = arith.constant 6 : i32
    %c7_i32_112 = arith.constant 7 : i32
    %329 = arith.subi %c7_i32_112, %c6_i32 : i32
    %330 = arith.index_cast %c6_i32 : i32 to index
    %c0_113 = arith.constant 0 : index
    %c0_114 = arith.constant 0 : index
    %331 = vector.load %arg6[%330, %c0_113, %c0_114] : memref<8x8x128xf32, #tpu.memory_space<vmem>>, vector<1x8x128xf32>
    %332 = vector.shape_cast %331 : vector<1x8x128xf32> to vector<8x128xf32>
    %cst_115 = arith.constant dense<0.000000e+00> : vector<8x128xf32>
    %333 = tpu.matmul %303, %13, %cst_115 {dimension_numbers = #tpu.dot_dimension_numbers<[1], [0], [0], [1], [0, 0, 1, 1], [], []>} : vector<8x32xf32>, vector<32x128xf32>, vector<8x128xf32> -> vector<8x128xf32>
    %334 = arith.addf %332, %333 : vector<8x128xf32>
    %335 = arith.index_cast %329 : i32 to index
    %c0_116 = arith.constant 0 : index
    %c0_117 = arith.constant 0 : index
    %336 = vector.load %arg7[%335, %c0_116, %c0_117] : memref<8x8x128xf32, #tpu.memory_space<vmem>>, vector<1x8x128xf32>
    %337 = vector.shape_cast %336 : vector<1x8x128xf32> to vector<8x128xf32>
    %cst_118 = arith.constant dense<0.000000e+00> : vector<8x128xf32>
    %338 = tpu.matmul %319, %15, %cst_118 {dimension_numbers = #tpu.dot_dimension_numbers<[1], [0], [0], [1], [0, 0, 1, 1], [], []>} : vector<8x32xf32>, vector<32x128xf32>, vector<8x128xf32> -> vector<8x128xf32>
    %339 = arith.addf %337, %338 : vector<8x128xf32>
    %cst_119 = arith.constant 0.000000e+00 : f32
    %340 = vector.broadcast %cst_119 : f32 to vector<8x128xf32>
    %341 = arith.subf %340, %334 : vector<8x128xf32>
    %342 = math.exp %341 : vector<8x128xf32>
    %cst_120 = arith.constant 1.000000e+00 : f32
    %343 = vector.broadcast %cst_120 : f32 to vector<8x128xf32>
    %344 = arith.addf %343, %342 : vector<8x128xf32>
    %345 = tpu.reciprocal %344 {approx = true} : vector<8x128xf32> -> vector<8x128xf32>
    %346 = math.tanh %334 : vector<8x128xf32>
    %347 = vector.extract_strided_slice %345 {offsets = [0, 0], sizes = [8, 32], strides = [1, 1]} : vector<8x128xf32> to vector<8x32xf32>
    %348 = vector.extract_strided_slice %345 {offsets = [0, 32], sizes = [8, 32], strides = [1, 1]} : vector<8x128xf32> to vector<8x32xf32>
    %349 = vector.extract_strided_slice %345 {offsets = [0, 96], sizes = [8, 32], strides = [1, 1]} : vector<8x128xf32> to vector<8x32xf32>
    %350 = vector.extract_strided_slice %346 {offsets = [0, 64], sizes = [8, 32], strides = [1, 1]} : vector<8x128xf32> to vector<8x32xf32>
    %351 = arith.mulf %348, %301 : vector<8x32xf32>
    %352 = arith.mulf %347, %350 : vector<8x32xf32>
    %353 = arith.addf %351, %352 : vector<8x32xf32>
    %354 = math.tanh %353 : vector<8x32xf32>
    %355 = arith.mulf %349, %354 : vector<8x32xf32>
    %cst_121 = arith.constant 0.000000e+00 : f32
    %356 = vector.broadcast %cst_121 : f32 to vector<8x128xf32>
    %357 = arith.subf %356, %339 : vector<8x128xf32>
    %358 = math.exp %357 : vector<8x128xf32>
    %cst_122 = arith.constant 1.000000e+00 : f32
    %359 = vector.broadcast %cst_122 : f32 to vector<8x128xf32>
    %360 = arith.addf %359, %358 : vector<8x128xf32>
    %361 = tpu.reciprocal %360 {approx = true} : vector<8x128xf32> -> vector<8x128xf32>
    %362 = math.tanh %339 : vector<8x128xf32>
    %363 = vector.extract_strided_slice %361 {offsets = [0, 0], sizes = [8, 32], strides = [1, 1]} : vector<8x128xf32> to vector<8x32xf32>
    %364 = vector.extract_strided_slice %361 {offsets = [0, 32], sizes = [8, 32], strides = [1, 1]} : vector<8x128xf32> to vector<8x32xf32>
    %365 = vector.extract_strided_slice %361 {offsets = [0, 96], sizes = [8, 32], strides = [1, 1]} : vector<8x128xf32> to vector<8x32xf32>
    %366 = vector.extract_strided_slice %362 {offsets = [0, 64], sizes = [8, 32], strides = [1, 1]} : vector<8x128xf32> to vector<8x32xf32>
    %367 = arith.mulf %364, %317 : vector<8x32xf32>
    %368 = arith.mulf %363, %366 : vector<8x32xf32>
    %369 = arith.addf %367, %368 : vector<8x32xf32>
    %370 = math.tanh %369 : vector<8x32xf32>
    %371 = arith.mulf %365, %370 : vector<8x32xf32>
    %372 = arith.index_cast %c6_i32 : i32 to index
    %c0_123 = arith.constant 0 : index
    %c0_124 = arith.constant 0 : index
    %373 = vector.load %arg5[%372, %c0_123, %c0_124] : memref<16x8x32xf32, #tpu.memory_space<vmem>>, vector<1x8x32xf32>
    %374 = vector.shape_cast %373 : vector<1x8x32xf32> to vector<8x32xf32>
    %375 = vector.shape_cast %355 : vector<8x32xf32> to vector<1x8x32xf32>
    tpu.vector_store %arg5[%372, %c0_123, %c0_124], %375 {strides = array<i32>} : memref<16x8x32xf32, #tpu.memory_space<vmem>>, vector<1x8x32xf32>,
    %c8_i32_125 = arith.constant 8 : i32
    %376 = arith.addi %c8_i32_125, %329 : i32
    %377 = arith.index_cast %376 : i32 to index
    %c0_126 = arith.constant 0 : index
    %c0_127 = arith.constant 0 : index
    %378 = vector.load %arg5[%377, %c0_126, %c0_127] : memref<16x8x32xf32, #tpu.memory_space<vmem>>, vector<1x8x32xf32>
    %379 = vector.shape_cast %378 : vector<1x8x32xf32> to vector<8x32xf32>
    %380 = vector.shape_cast %371 : vector<8x32xf32> to vector<1x8x32xf32>
    tpu.vector_store %arg5[%377, %c0_126, %c0_127], %380 {strides = array<i32>} : memref<16x8x32xf32, #tpu.memory_space<vmem>>, vector<1x8x32xf32>,
    %c7_i32_128 = arith.constant 7 : i32
    %c7_i32_129 = arith.constant 7 : i32
    %381 = arith.subi %c7_i32_129, %c7_i32_128 : i32
    %382 = arith.index_cast %c7_i32_128 : i32 to index
    %c0_130 = arith.constant 0 : index
    %c0_131 = arith.constant 0 : index
    %383 = vector.load %arg6[%382, %c0_130, %c0_131] : memref<8x8x128xf32, #tpu.memory_space<vmem>>, vector<1x8x128xf32>
    %384 = vector.shape_cast %383 : vector<1x8x128xf32> to vector<8x128xf32>
    %cst_132 = arith.constant dense<0.000000e+00> : vector<8x128xf32>
    %385 = tpu.matmul %355, %13, %cst_132 {dimension_numbers = #tpu.dot_dimension_numbers<[1], [0], [0], [1], [0, 0, 1, 1], [], []>} : vector<8x32xf32>, vector<32x128xf32>, vector<8x128xf32> -> vector<8x128xf32>
    %386 = arith.addf %384, %385 : vector<8x128xf32>
    %387 = arith.index_cast %381 : i32 to index
    %c0_133 = arith.constant 0 : index
    %c0_134 = arith.constant 0 : index
    %388 = vector.load %arg7[%387, %c0_133, %c0_134] : memref<8x8x128xf32, #tpu.memory_space<vmem>>, vector<1x8x128xf32>
    %389 = vector.shape_cast %388 : vector<1x8x128xf32> to vector<8x128xf32>
    %cst_135 = arith.constant dense<0.000000e+00> : vector<8x128xf32>
    %390 = tpu.matmul %371, %15, %cst_135 {dimension_numbers = #tpu.dot_dimension_numbers<[1], [0], [0], [1], [0, 0, 1, 1], [], []>} : vector<8x32xf32>, vector<32x128xf32>, vector<8x128xf32> -> vector<8x128xf32>
    %391 = arith.addf %389, %390 : vector<8x128xf32>
    %cst_136 = arith.constant 0.000000e+00 : f32
    %392 = vector.broadcast %cst_136 : f32 to vector<8x128xf32>
    %393 = arith.subf %392, %386 : vector<8x128xf32>
    %394 = math.exp %393 : vector<8x128xf32>
    %cst_137 = arith.constant 1.000000e+00 : f32
    %395 = vector.broadcast %cst_137 : f32 to vector<8x128xf32>
    %396 = arith.addf %395, %394 : vector<8x128xf32>
    %397 = tpu.reciprocal %396 {approx = true} : vector<8x128xf32> -> vector<8x128xf32>
    %398 = math.tanh %386 : vector<8x128xf32>
    %399 = vector.extract_strided_slice %397 {offsets = [0, 0], sizes = [8, 32], strides = [1, 1]} : vector<8x128xf32> to vector<8x32xf32>
    %400 = vector.extract_strided_slice %397 {offsets = [0, 32], sizes = [8, 32], strides = [1, 1]} : vector<8x128xf32> to vector<8x32xf32>
    %401 = vector.extract_strided_slice %397 {offsets = [0, 96], sizes = [8, 32], strides = [1, 1]} : vector<8x128xf32> to vector<8x32xf32>
    %402 = vector.extract_strided_slice %398 {offsets = [0, 64], sizes = [8, 32], strides = [1, 1]} : vector<8x128xf32> to vector<8x32xf32>
    %403 = arith.mulf %400, %353 : vector<8x32xf32>
    %404 = arith.mulf %399, %402 : vector<8x32xf32>
    %405 = arith.addf %403, %404 : vector<8x32xf32>
    %406 = math.tanh %405 : vector<8x32xf32>
    %407 = arith.mulf %401, %406 : vector<8x32xf32>
    %cst_138 = arith.constant 0.000000e+00 : f32
    %408 = vector.broadcast %cst_138 : f32 to vector<8x128xf32>
    %409 = arith.subf %408, %391 : vector<8x128xf32>
    %410 = math.exp %409 : vector<8x128xf32>
    %cst_139 = arith.constant 1.000000e+00 : f32
    %411 = vector.broadcast %cst_139 : f32 to vector<8x128xf32>
    %412 = arith.addf %411, %410 : vector<8x128xf32>
    %413 = tpu.reciprocal %412 {approx = true} : vector<8x128xf32> -> vector<8x128xf32>
    %414 = math.tanh %391 : vector<8x128xf32>
    %415 = vector.extract_strided_slice %413 {offsets = [0, 0], sizes = [8, 32], strides = [1, 1]} : vector<8x128xf32> to vector<8x32xf32>
    %416 = vector.extract_strided_slice %413 {offsets = [0, 32], sizes = [8, 32], strides = [1, 1]} : vector<8x128xf32> to vector<8x32xf32>
    %417 = vector.extract_strided_slice %413 {offsets = [0, 96], sizes = [8, 32], strides = [1, 1]} : vector<8x128xf32> to vector<8x32xf32>
    %418 = vector.extract_strided_slice %414 {offsets = [0, 64], sizes = [8, 32], strides = [1, 1]} : vector<8x128xf32> to vector<8x32xf32>
    %419 = arith.mulf %416, %369 : vector<8x32xf32>
    %420 = arith.mulf %415, %418 : vector<8x32xf32>
    %421 = arith.addf %419, %420 : vector<8x32xf32>
    %422 = math.tanh %421 : vector<8x32xf32>
    %423 = arith.mulf %417, %422 : vector<8x32xf32>
    %424 = arith.index_cast %c7_i32_128 : i32 to index
    %c0_140 = arith.constant 0 : index
    %c0_141 = arith.constant 0 : index
    %425 = vector.load %arg5[%424, %c0_140, %c0_141] : memref<16x8x32xf32, #tpu.memory_space<vmem>>, vector<1x8x32xf32>
    %426 = vector.shape_cast %425 : vector<1x8x32xf32> to vector<8x32xf32>
    %427 = vector.shape_cast %407 : vector<8x32xf32> to vector<1x8x32xf32>
    tpu.vector_store %arg5[%424, %c0_140, %c0_141], %427 {strides = array<i32>} : memref<16x8x32xf32, #tpu.memory_space<vmem>>, vector<1x8x32xf32>,
    %c8_i32_142 = arith.constant 8 : i32
    %428 = arith.addi %c8_i32_142, %381 : i32
    %429 = arith.index_cast %428 : i32 to index
    %c0_143 = arith.constant 0 : index
    %c0_144 = arith.constant 0 : index
    %430 = vector.load %arg5[%429, %c0_143, %c0_144] : memref<16x8x32xf32, #tpu.memory_space<vmem>>, vector<1x8x32xf32>
    %431 = vector.shape_cast %430 : vector<1x8x32xf32> to vector<8x32xf32>
    %432 = vector.shape_cast %423 : vector<8x32xf32> to vector<1x8x32xf32>
    tpu.vector_store %arg5[%429, %c0_143, %c0_144], %432 {strides = array<i32>} : memref<16x8x32xf32, #tpu.memory_space<vmem>>, vector<1x8x32xf32>,
    %c8_i32_145 = arith.constant 8 : i32
    return
  }
  func.func @transform_0(%arg0: i32) -> (i32, i32, i32) {
    %c0_i32 = arith.constant 0 : i32
    %c0_i32_0 = arith.constant 0 : i32
    %c0_i32_1 = arith.constant 0 : i32
    return %c0_i32, %arg0, %c0_i32_0 : i32, i32, i32
  }
  func.func @transform_1(%arg0: i32) -> (i32, i32) {
    %c0_i32 = arith.constant 0 : i32
    %c0_i32_0 = arith.constant 0 : i32
    %c0_i32_1 = arith.constant 0 : i32
    return %c0_i32, %c0_i32_0 : i32, i32
  }
  func.func @transform_2(%arg0: i32) -> (i32, i32, i32) {
    %c0_i32 = arith.constant 0 : i32
    %c0_i32_0 = arith.constant 0 : i32
    %c0_i32_1 = arith.constant 0 : i32
    %c0_i32_2 = arith.constant 0 : i32
    return %c0_i32, %c0_i32_0, %c0_i32_1 : i32, i32, i32
  }
  func.func @transform_3(%arg0: i32) -> (i32, i32) {
    %c0_i32 = arith.constant 0 : i32
    %c0_i32_0 = arith.constant 0 : i32
    %c0_i32_1 = arith.constant 0 : i32
    return %c0_i32, %c0_i32_0 : i32, i32
  }
  func.func @transform_4(%arg0: i32) -> (i32, i32, i32) {
    %c0_i32 = arith.constant 0 : i32
    %c0_i32_0 = arith.constant 0 : i32
    %c0_i32_1 = arith.constant 0 : i32
    return %c0_i32, %arg0, %c0_i32_0 : i32, i32, i32
  }
}

</mosaic_0001>

<llo_original>
// kernel: tpu_custom_call.1
$region0: #{tpu_custom_call.1}
  #allocation0 [shape = 'u32[]', space=smem, size = 0x4, offset = 0x4, fixed_abs, tag = 'smem constant byte address 0x4 - core index']
  #allocation1 [shape = 'u32[144,128]{1,0:T(1,128)}', space=vmem, size = 0x12000, scoped, tag = 'internal scratch']
  #allocation2 [shape = 'f32[8,8,128]{2,1,0:T(8,128)}', space=vmem, size = 0x8000, scoped, tag = 'scratch operand']
  #allocation3 [shape = 'f32[8,8,128]{2,1,0:T(8,128)}', space=vmem, size = 0x8000, scoped, tag = 'scratch operand']
  %s0 = inlined_call_operand.hbm [shape: bf16[8,8,96], index: 0, kind: input, shape index: {}]
  %s1 = inlined_call_operand.hbm [shape: bf16[96,256], index: 1, kind: input, shape index: {}]
  %s2 = inlined_call_operand.hbm [shape: f32[2,32,128], index: 2, kind: input, shape index: {}]
  %s3 = inlined_call_operand.vmem [shape: f32[1,256], index: 3, kind: input, shape index: {}]
  %s4 = inlined_call_operand.hbm [shape: f32[16,8,32], index: 4, kind: output, shape index: {}]
  %s5 = sld [smem:[#allocation0]]
  $region38: #{tpu_custom_call.1} parent=0
    _
  %s7 = ssub.s32 1, %s5
  %s8 = scalar_select 0, %s7, %s5
  $region1: #{tpu_custom_call.1} parent=0
    #allocation4 [shape = 'u8[16384]{0}', space=vmem, size = 0x4000, scoped, tag = 'input window, operand 0, single buffered']
    #allocation5 [shape = 's32[1]{0}', space=sflag, size = 0x4, scoped, tag = 'scoped memory for tpu_custom_call.1']
    #allocation6 [shape = 's32[1]{0}', space=sflag, size = 0x4, scoped, tag = 'scoped memory for tpu_custom_call.1']
    #allocation7 [shape = 'u8[49152]{0}', space=vmem, size = 0xc000, scoped, tag = 'input window, operand 1, single buffered']
    #allocation8 [shape = 's32[1]{0}', space=sflag, size = 0x4, scoped, tag = 'scoped memory for tpu_custom_call.1']
    #allocation9 [shape = 'u8[32768]{0}', space=vmem, size = 0x8000, scoped, tag = 'input window, operand 2, single buffered']
    #allocation10 [shape = 'u8[65536]{0}', space=vmem, size = 0x10000, scoped, tag = 'output window, operand 0, single buffered']
    %9 = vsyncpa [#allocation5], 0
    %10 = vsyncpa [#allocation8], 0
    %11 = vsyncpa [#allocation6], 0
    // Predicated region
    $region2: #{tpu_custom_call.1} parent=1 // pred_check
      _
    $region3: #{tpu_custom_call.1} parent=1 // pred_check_branch
      %13 = sbr.rel (0) target = $region5
    $region4: #{tpu_custom_call.1} parent=1 // pred_region
      %s15 = ssub.s32 512, 512
      %16 = vsyncadd [#allocation5], %s15
      %s17 = sshll.u32 [#allocation4], 4
      %s18 = int_to_ptr.vmem [resolvable:$true] %s17
      %23 = dma.hbm_to_vmem [thread:$0]  %s0, 512, %s18, [#allocation5], 64, 64, 4
    $region5: #{tpu_custom_call.1} parent=1 // pred_fallthru
      _
    // Predicated region
    $region6: #{tpu_custom_call.1} parent=1 // pred_check
      _
    $region7: #{tpu_custom_call.1} parent=1 // pred_check_branch
      %25 = sbr.rel (0) target = $region9
    $region8: #{tpu_custom_call.1} parent=1 // pred_region
      %s27 = ssub.s32 1536, 1536
      %28 = vsyncadd [#allocation8], %s27
      %s29 = sshll.u32 [#allocation7], 4
      %s30 = int_to_ptr.vmem [resolvable:$true] %s29
      %35 = dma.hbm_to_vmem [thread:$0]  %s1, 1536, %s30, [#allocation8], 128, 128, 8
    $region9: #{tpu_custom_call.1} parent=1 // pred_fallthru
      _
    // Predicated region
    $region10: #{tpu_custom_call.1} parent=1 // pred_check
      _
    $region11: #{tpu_custom_call.1} parent=1 // pred_check_branch
      %37 = sbr.rel (0) target = $region13
    $region12: #{tpu_custom_call.1} parent=1 // pred_region
      %s39 = ssub.s32 1024, 1024
      %40 = vsyncadd [#allocation8], %s39
      %s41 = sshll.u32 [#allocation9], 4
      %s42 = int_to_ptr.vmem [resolvable:$true] %s41
      %47 = dma.hbm_to_vmem [thread:$0]  %s2, 1024, %s42, [#allocation8], 128, 128, 8
    $region13: #{tpu_custom_call.1} parent=1 // pred_fallthru
      _
    // Predicated region
    $region14: #{tpu_custom_call.1} parent=1 // pred_check
      _
    $region15: #{tpu_custom_call.1} parent=1 // pred_check_branch
      %49 = sbr.rel (0) target = $region17
    $region16: #{tpu_custom_call.1} parent=1 // pred_region
      _
    $region17: #{tpu_custom_call.1} parent=1 // pred_fallthru
      _
    // Predicated region
    $region18: #{tpu_custom_call.1} parent=1 // pred_check
      _
    $region19: #{tpu_custom_call.1} parent=1 // pred_check_branch
      %51 = sbr.rel (0) target = $region21
    $region20: #{tpu_custom_call.1} parent=1 // pred_region
      %52 = dma.done [#allocation5], 512
    $region21: #{tpu_custom_call.1} parent=1 // pred_fallthru
      _
    // Predicated region
    $region22: #{tpu_custom_call.1} parent=1 // pred_check
      _
    $region23: #{tpu_custom_call.1} parent=1 // pred_check_branch
      %54 = sbr.rel (0) target = $region25
    $region24: #{tpu_custom_call.1} parent=1 // pred_region
      %55 = dma.done [#allocation8], 1536
    $region25: #{tpu_custom_call.1} parent=1 // pred_fallthru
      _
    // Predicated region
    $region26: #{tpu_custom_call.1} parent=1 // pred_check
      _
    $region27: #{tpu_custom_call.1} parent=1 // pred_check_branch
      %57 = sbr.rel (0) target = $region29
    $region28: #{tpu_custom_call.1} parent=1 // pred_region
      %58 = dma.done [#allocation8], 1024
    $region29: #{tpu_custom_call.1} parent=1 // pred_fallthru
      _
    %v60 = vld [vmem:[#allocation4] sm:$0xf]
    %v61 = vld [vmem:[#allocation4 + $0x4] sm:$0xf]
    %v62 = vld [vmem:[#allocation4 + $0x8] sm:$0xf]
    %v63 = vld [vmem:[#allocation4 + $0xc] sm:$0xf]
    %v64 = vld [vmem:[#allocation4 + $0x10] sm:$0xf]
    %v65 = vld [vmem:[#allocation4 + $0x14] sm:$0xf]
    %v66 = vld [vmem:[#allocation4 + $0x18] sm:$0xf]
    %v67 = vld [vmem:[#allocation4 + $0x1c] sm:$0xf]
    %v68 = vld [vmem:[#allocation7] sm:$0xff]
    %v69 = vld [vmem:[#allocation7 + $0x8] sm:$0xff]
    %v70 = vld [vmem:[#allocation7 + $0x10] sm:$0xff]
    %v71 = vld [vmem:[#allocation7 + $0x18] sm:$0xff]
    %v72 = vld [vmem:[#allocation7 + $0x20] sm:$0xff]
    %v73 = vld [vmem:[#allocation7 + $0x28] sm:$0xff]
    %v74 = vld [vmem:[#allocation7 + $0x30] sm:$0xff]
    %v75 = vld [vmem:[#allocation7 + $0x38] sm:$0xff]
    %v76 = vld [vmem:[#allocation7 + $0x40] sm:$0xff]
    %v77 = vld [vmem:[#allocation7 + $0x48] sm:$0xff]
    %v78 = vld [vmem:[#allocation7 + $0x50] sm:$0xff]
    %v79 = vld [vmem:[#allocation7 + $0x58] sm:$0xff]
    %v80 = vld [vmem:[%s3] sm:$0x3]
    %v82 = vlaneseq
    %v83 = vshrl.u32 %v82, 7
    %v84 = vsub.s32 0, %v83
    %v85 = vrot.slane %v80, %v84
    %v86 = vlaneseq
    %v87 = vshrl.u32 %v86, 7
    %v88 = vsub.s32 1, %v87
    %v89 = vrot.slane %v80, %v88
    %v100 = vunpack.c.l.b16 %v60
    %v101 = vunpack.c.l.b16 %v61
    %v102 = vunpack.c.l.b16 %v62
    %v103 = vunpack.c.l.b16 %v63
    %v104 = vunpack.c.l.b16 %v64
    %v105 = vunpack.c.l.b16 %v65
    %v106 = vunpack.c.l.b16 %v66
    %v107 = vunpack.c.l.b16 %v67
    %v108 = vpack.c.b16 %v101, %v100
    %v109 = vpack.c.b16 %v103, %v102
    %v110 = vpack.c.b16 %v105, %v104
    %v111 = vpack.c.b16 %v107, %v106
    %v124 = vunpack.c.l.b16 %v68
    %v125 = vunpack.c.h.b16 %v68
    %v126 = vunpack.c.l.b16 %v69
    %v127 = vunpack.c.h.b16 %v69
    %v128 = vunpack.c.l.b16 %v70
    %v129 = vunpack.c.h.b16 %v70
    %v130 = vunpack.c.l.b16 %v71
    %v131 = vunpack.c.h.b16 %v71
    %v132 = vunpack.c.l.b16 %v72
    %v133 = vunpack.c.h.b16 %v72
    %v134 = vunpack.c.l.b16 %v73
    %v135 = vunpack.c.h.b16 %v73
    %v136 = vunpack.c.l.b16 %v74
    %v137 = vunpack.c.h.b16 %v74
    %v138 = vunpack.c.l.b16 %v75
    %v139 = vunpack.c.h.b16 %v75
    %v140 = vunpack.c.l.b16 %v76
    %v141 = vunpack.c.h.b16 %v76
    %v142 = vunpack.c.l.b16 %v77
    %v143 = vunpack.c.h.b16 %v77
    %v144 = vunpack.c.l.b16 %v78
    %v145 = vunpack.c.h.b16 %v78
    %v146 = vunpack.c.l.b16 %v79
    %v147 = vunpack.c.h.b16 %v79
    %v148 = vpack.c.b16 %v126, %v124
    %v149 = vpack.c.b16 %v127, %v125
    %v150 = vpack.c.b16 %v130, %v128
    %v151 = vpack.c.b16 %v131, %v129
    %v152 = vpack.c.b16 %v134, %v132
    %v153 = vpack.c.b16 %v135, %v133
    %v154 = vpack.c.b16 %v138, %v136
    %v155 = vpack.c.b16 %v139, %v137
    %v156 = vpack.c.b16 %v142, %v140
    %v157 = vpack.c.b16 %v143, %v141
    %v158 = vpack.c.b16 %v146, %v144
    %v159 = vpack.c.b16 %v147, %v145
    %vm172 = vcmask 785408
    %v174 = vsel %vm172, %v108, 0
    %v177 = vsel %vm172, %v109, 0
    %v180 = vsel %vm172, %v110, 0
    %v183 = vsel %vm172, %v111, 0
    %185 = vmatprep.subr.bf16.mxu0 0
    %186 = vmatpush1.bf16.msra.mxu0 0
    %187 = vmatprep.subr.bf16.mxu0 0
    %188 = vmatpush1.bf16.msra.mxu0 0
    %189 = vmatprep.subr.bf16.mxu0 %v159
    %190 = vmatpush1.bf16.msra.mxu0 %v158
    %191 = vmatprep.subr.bf16.mxu0 %v157
    %192 = vmatpush1.bf16.msra.mxu0 %v156
    %193 = vmatprep.subr.bf16.mxu0 %v155
    %194 = vmatpush1.bf16.msra.mxu0 %v154
    %195 = vmatprep.subr.bf16.mxu0 %v153
    %196 = vmatpush1.bf16.msra.mxu0 %v152
    %197 = vmatprep.subr.bf16.mxu0 %v151
    %198 = vmatpush1.bf16.msra.mxu0 %v150
    %199 = vmatprep.subr.bf16.mxu0 %v149
    %200 = vmatpush1.bf16.msra.mxu0 %v148
    %201 = vmatprep.subr.bf16.mxu0 0
    %202 = vmatpush2.bf16.msra.mxu0 0
    %203 = vmatprep.subr.bf16.mxu0 0
    %204 = vmatpush2.bf16.msra.mxu0 0
    %205 = vmatprep.subr.bf16.mxu0 0
    %206 = vmatpush2.bf16.msra.mxu0 0
    %207 = vmatprep.subr.bf16.mxu0 0
    %208 = vmatpush2.bf16.msra.mxu0 0
    %209 = vmatprep.subr.bf16.mxu0 0
    %210 = vmatpush2.bf16.msra.mxu0 0
    %211 = vmatprep.subr.bf16.mxu0 0
    %212 = vmatpush2.bf16.msra.mxu0 0
    %213 = vmatprep.subr.bf16.mxu0 0
    %214 = vmatpush2.bf16.msra.mxu0 0
    %215 = vmatprep.subr.bf16.mxu0 0
    %216 = vmatpush2.bf16.msra.mxu0 0
    %217 = vmatprep.mubr.bf16.mxu0 0
    %218 = vmatmul.mubr.bf16.gmra.mxu0 %v174
    %v219 = vpop.f32.mrf.mxu0
    %v220 = vadd.f32 %v85, %v219
    %v221 = vpop.f32.mrf.mxu0
    %v222 = vadd.f32 %v89, %v221
    %v223 = vpop.f32.mrf.mxu0
    %v224 = vadd.f32 %v85, %v223
    %v225 = vpop.f32.mrf.mxu0
    %v226 = vadd.f32 %v89, %v225
    %227 = vmatprep.mubr.bf16.mxu0 0
    %228 = vmatmul.mubr.bf16.gmra.mxu0 %v177
    %v229 = vpop.f32.mrf.mxu0
    %v230 = vadd.f32 %v85, %v229
    %v231 = vpop.f32.mrf.mxu0
    %v232 = vadd.f32 %v89, %v231
    %v233 = vpop.f32.mrf.mxu0
    %v234 = vadd.f32 %v85, %v233
    %v235 = vpop.f32.mrf.mxu0
    %v236 = vadd.f32 %v89, %v235
    %237 = vmatprep.mubr.bf16.mxu0 0
    %238 = vmatmul.mubr.bf16.gmra.mxu0 %v180
    %v239 = vpop.f32.mrf.mxu0
    %v240 = vadd.f32 %v85, %v239
    %v241 = vpop.f32.mrf.mxu0
    %v242 = vadd.f32 %v89, %v241
    %v243 = vpop.f32.mrf.mxu0
    %v244 = vadd.f32 %v85, %v243
    %v245 = vpop.f32.mrf.mxu0
    %v246 = vadd.f32 %v89, %v245
    %247 = vmatprep.mubr.bf16.mxu0 0
    %248 = vmatmul.mubr.bf16.gmra.mxu0 %v183
    %v249 = vpop.f32.mrf.mxu0
    %v250 = vadd.f32 %v85, %v249
    %v251 = vpop.f32.mrf.mxu0
    %v252 = vadd.f32 %v89, %v251
    %v253 = vpop.f32.mrf.mxu0
    %v254 = vadd.f32 %v85, %v253
    %v255 = vpop.f32.mrf.mxu0
    %v256 = vadd.f32 %v89, %v255
    %257 = vdwg.mxu0
    %258 = vst [vmem:[#allocation2] sm:$0xff] %v220
    %259 = vst [vmem:[#allocation2 + $0x8] sm:$0xff] %v224
    %260 = vst [vmem:[#allocation2 + $0x10] sm:$0xff] %v230
    %261 = vst [vmem:[#allocation2 + $0x18] sm:$0xff] %v234
    %262 = vst [vmem:[#allocation2 + $0x20] sm:$0xff] %v240
    %263 = vst [vmem:[#allocation2 + $0x28] sm:$0xff] %v244
    %264 = vst [vmem:[#allocation2 + $0x30] sm:$0xff] %v250
    %265 = vst [vmem:[#allocation2 + $0x38] sm:$0xff] %v254
    %266 = vst [vmem:[#allocation3] sm:$0xff] %v222
    %267 = vst [vmem:[#allocation3 + $0x8] sm:$0xff] %v226
    %268 = vst [vmem:[#allocation3 + $0x10] sm:$0xff] %v232
    %269 = vst [vmem:[#allocation3 + $0x18] sm:$0xff] %v236
    %270 = vst [vmem:[#allocation3 + $0x20] sm:$0xff] %v242
    %271 = vst [vmem:[#allocation3 + $0x28] sm:$0xff] %v246
    %272 = vst [vmem:[#allocation3 + $0x30] sm:$0xff] %v252
    %273 = vst [vmem:[#allocation3 + $0x38] sm:$0xff] %v256
    %v274 = vld [vmem:[#allocation9] sm:$0xff]
    %v275 = vld [vmem:[#allocation9 + $0x8] sm:$0xff]
    %v276 = vld [vmem:[#allocation9 + $0x10] sm:$0xff]
    %v277 = vld [vmem:[#allocation9 + $0x18] sm:$0xff]
    %s278 = scalar_lea.vmem [#allocation9], 32
    %v279 = vld [vmem:[%s278] sm:$0xff]
    %v280 = vld [vmem:[%s278 + $0x8] sm:$0xff]
    %v281 = vld [vmem:[%s278 + $0x10] sm:$0xff]
    %v282 = vld [vmem:[%s278 + $0x18] sm:$0xff]
    %v283 = vld [vmem:[#allocation2] sm:$0xff]
    %vm284 = vcmask 261120
    %v286 = vsel %vm284, 0.0, 0
    %288 = vmatprep.subr.mxu0 0.0
    %289 = vmatpush1.msra.mxu0 0.0
    %290 = vmatprep.subr.mxu0 0.0
    %291 = vmatpush1.msra.mxu0 0.0
    %292 = vmatprep.subr.mxu0 0.0
    %293 = vmatpush1.msra.mxu0 0.0
    %294 = vmatprep.subr.mxu0 0.0
    %295 = vmatpush1.msra.mxu0 0.0
    %296 = vmatprep.subr.mxu0 0.0
    %297 = vmatpush1.msra.mxu0 0.0
    %298 = vmatprep.subr.mxu0 0.0
    %299 = vmatpush1.msra.mxu0 0.0
    %300 = vmatprep.subr.mxu0 0.0
    %301 = vmatpush1.msra.mxu0 0.0
    %302 = vmatprep.subr.mxu0 0.0
    %303 = vmatpush1.msra.mxu0 0.0
    %304 = vmatprep.subr.mxu0 0.0
    %305 = vmatpush1.msra.mxu0 0.0
    %306 = vmatprep.subr.mxu0 0.0
    %307 = vmatpush1.msra.mxu0 0.0
    %308 = vmatprep.subr.mxu0 0.0
    %309 = vmatpush1.msra.mxu0 0.0
    %310 = vmatprep.subr.mxu0 0.0
    %311 = vmatpush1.msra.mxu0 0.0
    %312 = vmatprep.subr.mxu0 0.0
    %313 = vmatpush1.msra.mxu0 %v277
    %314 = vmatprep.subr.mxu0 0.0
    %315 = vmatpush1.msra.mxu0 %v276
    %316 = vmatprep.subr.mxu0 0.0
    %317 = vmatpush1.msra.mxu0 %v275
    %318 = vmatprep.subr.mxu0 0.0
    %319 = vmatpush1.msra.mxu0 %v274
    %320 = vmatprep.subr.mxu0 0.0
    %321 = vmatpush2.msra.mxu0 0.0
    %322 = vmatprep.subr.mxu0 0.0
    %323 = vmatpush2.msra.mxu0 0.0
    %324 = vmatprep.subr.mxu0 0.0
    %325 = vmatpush2.msra.mxu0 0.0
    %326 = vmatprep.subr.mxu0 0.0
    %327 = vmatpush2.msra.mxu0 0.0
    %328 = vmatprep.subr.mxu0 0.0
    %329 = vmatpush2.msra.mxu0 0.0
    %330 = vmatprep.subr.mxu0 0.0
    %331 = vmatpush2.msra.mxu0 0.0
    %332 = vmatprep.subr.mxu0 0.0
    %333 = vmatpush2.msra.mxu0 0.0
    %334 = vmatprep.subr.mxu0 0.0
    %335 = vmatpush2.msra.mxu0 0.0
    %336 = vmatprep.subr.mxu0 0.0
    %337 = vmatpush2.msra.mxu0 0.0
    %338 = vmatprep.subr.mxu0 0.0
    %339 = vmatpush2.msra.mxu0 0.0
    %340 = vmatprep.subr.mxu0 0.0
    %341 = vmatpush2.msra.mxu0 0.0
    %342 = vmatprep.subr.mxu0 0.0
    %343 = vmatpush2.msra.mxu0 0.0
    %344 = vmatprep.subr.mxu0 0.0
    %345 = vmatpush2.msra.mxu0 0.0
    %346 = vmatprep.subr.mxu0 0.0
    %347 = vmatpush2.msra.mxu0 0.0
    %348 = vmatprep.subr.mxu0 0.0
    %349 = vmatpush2.msra.mxu0 0.0
    %350 = vmatprep.subr.mxu0 0.0
    %351 = vmatpush2.msra.mxu0 0.0
    %352 = vmatprep.mubr.f32.mxu0 0.0
    %353 = vmatmul.mubr.f32.gmra.mxu0 %v286
    %v354 = vpop.f32.mrf.mxu0
    %v355 = vadd.f32 0.0, %v354
    %v356 = vpop.f32.mrf.mxu0
    %357 = vdwg.mxu0
    %v358 = vadd.f32 %v283, %v355
    %s359 = scalar_lea.vmem [#allocation3], 56
    %v360 = vld [vmem:[%s359] sm:$0xff]
    %361 = vmatprep.subr.mxu0 0.0
    %362 = vmatpush1.msra.mxu0 0.0
    %363 = vmatprep.subr.mxu0 0.0
    %364 = vmatpush1.msra.mxu0 0.0
    %365 = vmatprep.subr.mxu0 0.0
    %366 = vmatpush1.msra.mxu0 0.0
    %367 = vmatprep.subr.mxu0 0.0
    %368 = vmatpush1.msra.mxu0 0.0
    %369 = vmatprep.subr.mxu0 0.0
    %370 = vmatpush1.msra.mxu0 0.0
    %371 = vmatprep.subr.mxu0 0.0
    %372 = vmatpush1.msra.mxu0 0.0
    %373 = vmatprep.subr.mxu0 0.0
    %374 = vmatpush1.msra.mxu0 0.0
    %375 = vmatprep.subr.mxu0 0.0
    %376 = vmatpush1.msra.mxu0 0.0
    %377 = vmatprep.subr.mxu0 0.0
    %378 = vmatpush1.msra.mxu0 0.0
    %379 = vmatprep.subr.mxu0 0.0
    %380 = vmatpush1.msra.mxu0 0.0
    %381 = vmatprep.subr.mxu0 0.0
    %382 = vmatpush1.msra.mxu0 0.0
    %383 = vmatprep.subr.mxu0 0.0
    %384 = vmatpush1.msra.mxu0 0.0
    %385 = vmatprep.subr.mxu0 0.0
    %386 = vmatpush1.msra.mxu0 %v282
    %387 = vmatprep.subr.mxu0 0.0
    %388 = vmatpush1.msra.mxu0 %v281
    %389 = vmatprep.subr.mxu0 0.0
    %390 = vmatpush1.msra.mxu0 %v280
    %391 = vmatprep.subr.mxu0 0.0
    %392 = vmatpush1.msra.mxu0 %v279
    %393 = vmatprep.subr.mxu0 0.0
    %394 = vmatpush2.msra.mxu0 0.0
    %395 = vmatprep.subr.mxu0 0.0
    %396 = vmatpush2.msra.mxu0 0.0
    %397 = vmatprep.subr.mxu0 0.0
    %398 = vmatpush2.msra.mxu0 0.0
    %399 = vmatprep.subr.mxu0 0.0
    %400 = vmatpush2.msra.mxu0 0.0
    %401 = vmatprep.subr.mxu0 0.0
    %402 = vmatpush2.msra.mxu0 0.0
    %403 = vmatprep.subr.mxu0 0.0
    %404 = vmatpush2.msra.mxu0 0.0
    %405 = vmatprep.subr.mxu0 0.0
    %406 = vmatpush2.msra.mxu0 0.0
    %407 = vmatprep.subr.mxu0 0.0
    %408 = vmatpush2.msra.mxu0 0.0
    %409 = vmatprep.subr.mxu0 0.0
    %410 = vmatpush2.msra.mxu0 0.0
    %411 = vmatprep.subr.mxu0 0.0
    %412 = vmatpush2.msra.mxu0 0.0
    %413 = vmatprep.subr.mxu0 0.0
    %414 = vmatpush2.msra.mxu0 0.0
    %415 = vmatprep.subr.mxu0 0.0
    %416 = vmatpush2.msra.mxu0 0.0
    %417 = vmatprep.subr.mxu0 0.0
    %418 = vmatpush2.msra.mxu0 0.0
    %419 = vmatprep.subr.mxu0 0.0
    %420 = vmatpush2.msra.mxu0 0.0
    %421 = vmatprep.subr.mxu0 0.0
    %422 = vmatpush2.msra.mxu0 0.0
    %423 = vmatprep.subr.mxu0 0.0
    %424 = vmatpush2.msra.mxu0 0.0
    %425 = vmatprep.mubr.f32.mxu0 0.0
    %426 = vmatmul.mubr.f32.gmra.mxu0 %v286
    %v427 = vpop.f32.mrf.mxu0
    %v428 = vadd.f32 0.0, %v427
    %v429 = vpop.f32.mrf.mxu0
    %430 = vdwg.mxu0
    %v431 = vadd.f32 %v360, %v428
    %v432 = vsub.f32 0.0, %v358
    %v433 = vmul.f32 %v432, 1.442695
    %v434 = vpow.pop %v433
    %v435 = vadd.f32 %v434, 1.0
    %v436 = vrcp.pop %v435
    %v437 = vtanh.pop %v358
    %v438 = vmul.f32 %v436, 0.0
    %440 = vrot.lane.b32.xlu0 %v437, 64
    %v441 = vpop.permute.xlu0 %440
    %v443 = vmul.f32 %v436, %v441
    %445 = vrot.lane.b32.xlu0 %v443, 32
    %v446 = vpop.permute.xlu0 %445
    %v448 = vadd.f32 %v438, %v446
    %v449 = vtanh.pop %v448
    %451 = vrot.lane.b32.xlu0 %v449, 64
    %v452 = vpop.permute.xlu0 %451
    %v454 = vmul.f32 %v436, %v452
    %v455 = vsub.f32 0.0, %v431
    %v456 = vmul.f32 %v455, 1.442695
    %v457 = vpow.pop %v456
    %v458 = vadd.f32 %v457, 1.0
    %v459 = vrcp.pop %v458
    %v460 = vtanh.pop %v431
    %v461 = vmul.f32 %v459, 0.0
    %463 = vrot.lane.b32.xlu0 %v460, 64
    %v464 = vpop.permute.xlu0 %463
    %v466 = vmul.f32 %v459, %v464
    %468 = vrot.lane.b32.xlu0 %v466, 32
    %v469 = vpop.permute.xlu0 %468
    %v471 = vadd.f32 %v461, %v469
    %v472 = vtanh.pop %v471
    %474 = vrot.lane.b32.xlu0 %v472, 64
    %v475 = vpop.permute.xlu0 %474
    %v477 = vmul.f32 %v459, %v475
    %479 = vrot.lane.b32.xlu0 %v454, 32
    %v480 = vpop.permute.xlu0 %479
    %482 = vst.msk [vmem:[#allocation10] sm:$0xff] %vm284, %v480
    %484 = vrot.lane.b32.xlu0 %v477, 32
    %v485 = vpop.permute.xlu0 %484
    %s487 = scalar_lea.vmem [#allocation10], 120
    %488 = vst.msk [vmem:[%s487] sm:$0xff] %vm284, %v485
    %s489 = scalar_lea.vmem [#allocation2], 8
    %v490 = vld [vmem:[%s489] sm:$0xff]
    %v491 = vsel %vm284, %v480, 0
    %493 = vmatprep.subr.mxu0 0.0
    %494 = vmatpush1.msra.mxu0 0.0
    %495 = vmatprep.subr.mxu0 0.0
    %496 = vmatpush1.msra.mxu0 0.0
    %497 = vmatprep.subr.mxu0 0.0
    %498 = vmatpush1.msra.mxu0 0.0
    %499 = vmatprep.subr.mxu0 0.0
    %500 = vmatpush1.msra.mxu0 0.0
    %501 = vmatprep.subr.mxu0 0.0
    %502 = vmatpush1.msra.mxu0 0.0
    %503 = vmatprep.subr.mxu0 0.0
    %504 = vmatpush1.msra.mxu0 0.0
    %505 = vmatprep.subr.mxu0 0.0
    %506 = vmatpush1.msra.mxu0 0.0
    %507 = vmatprep.subr.mxu0 0.0
    %508 = vmatpush1.msra.mxu0 0.0
    %509 = vmatprep.subr.mxu0 0.0
    %510 = vmatpush1.msra.mxu0 0.0
    %511 = vmatprep.subr.mxu0 0.0
    %512 = vmatpush1.msra.mxu0 0.0
    %513 = vmatprep.subr.mxu0 0.0
    %514 = vmatpush1.msra.mxu0 0.0
    %515 = vmatprep.subr.mxu0 0.0
    %516 = vmatpush1.msra.mxu0 0.0
    %517 = vmatprep.subr.mxu0 0.0
    %518 = vmatpush1.msra.mxu0 %v277
    %519 = vmatprep.subr.mxu0 0.0
    %520 = vmatpush1.msra.mxu0 %v276
    %521 = vmatprep.subr.mxu0 0.0
    %522 = vmatpush1.msra.mxu0 %v275
    %523 = vmatprep.subr.mxu0 0.0
    %524 = vmatpush1.msra.mxu0 %v274
    %525 = vmatprep.subr.mxu0 0.0
    %526 = vmatpush2.msra.mxu0 0.0
    %527 = vmatprep.subr.mxu0 0.0
    %528 = vmatpush2.msra.mxu0 0.0
    %529 = vmatprep.subr.mxu0 0.0
    %530 = vmatpush2.msra.mxu0 0.0
    %531 = vmatprep.subr.mxu0 0.0
    %532 = vmatpush2.msra.mxu0 0.0
    %533 = vmatprep.subr.mxu0 0.0
    %534 = vmatpush2.msra.mxu0 0.0
    %535 = vmatprep.subr.mxu0 0.0
    %536 = vmatpush2.msra.mxu0 0.0
    %537 = vmatprep.subr.mxu0 0.0
    %538 = vmatpush2.msra.mxu0 0.0
    %539 = vmatprep.subr.mxu0 0.0
    %540 = vmatpush2.msra.mxu0 0.0
    %541 = vmatprep.subr.mxu0 0.0
    %542 = vmatpush2.msra.mxu0 0.0
    %543 = vmatprep.subr.mxu0 0.0
    %544 = vmatpush2.msra.mxu0 0.0
    %545 = vmatprep.subr.mxu0 0.0
    %546 = vmatpush2.msra.mxu0 0.0
    %547 = vmatprep.subr.mxu0 0.0
    %548 = vmatpush2.msra.mxu0 0.0
    %549 = vmatprep.subr.mxu0 0.0
    %550 = vmatpush2.msra.mxu0 0.0
    %551 = vmatprep.subr.mxu0 0.0
    %552 = vmatpush2.msra.mxu0 0.0
    %553 = vmatprep.subr.mxu0 0.0
    %554 = vmatpush2.msra.mxu0 0.0
    %555 = vmatprep.subr.mxu0 0.0
    %556 = vmatpush2.msra.mxu0 0.0
    %557 = vmatprep.mubr.f32.mxu0 0.0
    %558 = vmatmul.mubr.f32.gmra.mxu0 %v491
    %v559 = vpop.f32.mrf.mxu0
    %v560 = vadd.f32 0.0, %v559
    %v561 = vpop.f32.mrf.mxu0
    %562 = vdwg.mxu0
    %v563 = vadd.f32 %v490, %v560
    %s564 = scalar_lea.vmem [#allocation3], 48
    %v565 = vld [vmem:[%s564] sm:$0xff]
    %v566 = vsel %vm284, %v485, 0
    %568 = vmatprep.subr.mxu0 0.0
    %569 = vmatpush1.msra.mxu0 0.0
    %570 = vmatprep.subr.mxu0 0.0
    %571 = vmatpush1.msra.mxu0 0.0
    %572 = vmatprep.subr.mxu0 0.0
    %573 = vmatpush1.msra.mxu0 0.0
    %574 = vmatprep.subr.mxu0 0.0
    %575 = vmatpush1.msra.mxu0 0.0
    %576 = vmatprep.subr.mxu0 0.0
    %577 = vmatpush1.msra.mxu0 0.0
    %578 = vmatprep.subr.mxu0 0.0
    %579 = vmatpush1.msra.mxu0 0.0
    %580 = vmatprep.subr.mxu0 0.0
    %581 = vmatpush1.msra.mxu0 0.0
    %582 = vmatprep.subr.mxu0 0.0
    %583 = vmatpush1.msra.mxu0 0.0
    %584 = vmatprep.subr.mxu0 0.0
    %585 = vmatpush1.msra.mxu0 0.0
    %586 = vmatprep.subr.mxu0 0.0
    %587 = vmatpush1.msra.mxu0 0.0
    %588 = vmatprep.subr.mxu0 0.0
    %589 = vmatpush1.msra.mxu0 0.0
    %590 = vmatprep.subr.mxu0 0.0
    %591 = vmatpush1.msra.mxu0 0.0
    %592 = vmatprep.subr.mxu0 0.0
    %593 = vmatpush1.msra.mxu0 %v282
    %594 = vmatprep.subr.mxu0 0.0
    %595 = vmatpush1.msra.mxu0 %v281
    %596 = vmatprep.subr.mxu0 0.0
    %597 = vmatpush1.msra.mxu0 %v280
    %598 = vmatprep.subr.mxu0 0.0
    %599 = vmatpush1.msra.mxu0 %v279
    %600 = vmatprep.subr.mxu0 0.0
    %601 = vmatpush2.msra.mxu0 0.0
    %602 = vmatprep.subr.mxu0 0.0
    %603 = vmatpush2.msra.mxu0 0.0
    %604 = vmatprep.subr.mxu0 0.0
    %605 = vmatpush2.msra.mxu0 0.0
    %606 = vmatprep.subr.mxu0 0.0
    %607 = vmatpush2.msra.mxu0 0.0
    %608 = vmatprep.subr.mxu0 0.0
    %609 = vmatpush2.msra.mxu0 0.0
    %610 = vmatprep.subr.mxu0 0.0
    %611 = vmatpush2.msra.mxu0 0.0
    %612 = vmatprep.subr.mxu0 0.0
    %613 = vmatpush2.msra.mxu0 0.0
    %614 = vmatprep.subr.mxu0 0.0
    %615 = vmatpush2.msra.mxu0 0.0
    %616 = vmatprep.subr.mxu0 0.0
    %617 = vmatpush2.msra.mxu0 0.0
    %618 = vmatprep.subr.mxu0 0.0
    %619 = vmatpush2.msra.mxu0 0.0
    %620 = vmatprep.subr.mxu0 0.0
    %621 = vmatpush2.msra.mxu0 0.0
    %622 = vmatprep.subr.mxu0 0.0
    %623 = vmatpush2.msra.mxu0 0.0
    %624 = vmatprep.subr.mxu0 0.0
    %625 = vmatpush2.msra.mxu0 0.0
    %626 = vmatprep.subr.mxu0 0.0
    %627 = vmatpush2.msra.mxu0 0.0
    %628 = vmatprep.subr.mxu0 0.0
    %629 = vmatpush2.msra.mxu0 0.0
    %630 = vmatprep.subr.mxu0 0.0
    %631 = vmatpush2.msra.mxu0 0.0
    %632 = vmatprep.mubr.f32.mxu0 0.0
    %633 = vmatmul.mubr.f32.gmra.mxu0 %v566
    %v634 = vpop.f32.mrf.mxu0
    %v635 = vadd.f32 0.0, %v634
    %v636 = vpop.f32.mrf.mxu0
    %637 = vdwg.mxu0
    %v638 = vadd.f32 %v565, %v635
    %v639 = vsub.f32 0.0, %v563
    %v640 = vmul.f32 %v639, 1.442695
    %v641 = vpow.pop %v640
    %v642 = vadd.f32 %v641, 1.0
    %v643 = vrcp.pop %v642
    %v644 = vtanh.pop %v563
    %v645 = vmul.f32 %v643, %v448
    %647 = vrot.lane.b32.xlu0 %v644, 64
    %v648 = vpop.permute.xlu0 %647
    %v650 = vmul.f32 %v643, %v648
    %652 = vrot.lane.b32.xlu0 %v650, 32
    %v653 = vpop.permute.xlu0 %652
    %v655 = vadd.f32 %v645, %v653
    %v656 = vtanh.pop %v655
    %658 = vrot.lane.b32.xlu0 %v656, 64
    %v659 = vpop.permute.xlu0 %658
    %v661 = vmul.f32 %v643, %v659
    %v662 = vsub.f32 0.0, %v638
    %v663 = vmul.f32 %v662, 1.442695
    %v664 = vpow.pop %v663
    %v665 = vadd.f32 %v664, 1.0
    %v666 = vrcp.pop %v665
    %v667 = vtanh.pop %v638
    %v668 = vmul.f32 %v666, %v471
    %670 = vrot.lane.b32.xlu0 %v667, 64
    %v671 = vpop.permute.xlu0 %670
    %v673 = vmul.f32 %v666, %v671
    %675 = vrot.lane.b32.xlu0 %v673, 32
    %v676 = vpop.permute.xlu0 %675
    %v678 = vadd.f32 %v668, %v676
    %v679 = vtanh.pop %v678
    %681 = vrot.lane.b32.xlu0 %v679, 64
    %v682 = vpop.permute.xlu0 %681
    %v684 = vmul.f32 %v666, %v682
    %686 = vrot.lane.b32.xlu0 %v661, 32
    %v687 = vpop.permute.xlu0 %686
    %s689 = scalar_lea.vmem [#allocation10], 8
    %690 = vst.msk [vmem:[%s689] sm:$0xff] %vm284, %v687
    %692 = vrot.lane.b32.xlu0 %v684, 32
    %v693 = vpop.permute.xlu0 %692
    %s695 = scalar_lea.vmem [#allocation10], 112
    %696 = vst.msk [vmem:[%s695] sm:$0xff] %vm284, %v693
    %s697 = scalar_lea.vmem [#allocation2], 16
    %v698 = vld [vmem:[%s697] sm:$0xff]
    %v699 = vsel %vm284, %v687, 0
    %701 = vmatprep.subr.mxu0 0.0
    %702 = vmatpush1.msra.mxu0 0.0
    %703 = vmatprep.subr.mxu0 0.0
    %704 = vmatpush1.msra.mxu0 0.0
    %705 = vmatprep.subr.mxu0 0.0
    %706 = vmatpush1.msra.mxu0 0.0
    %707 = vmatprep.subr.mxu0 0.0
    %708 = vmatpush1.msra.mxu0 0.0
    %709 = vmatprep.subr.mxu0 0.0
    %710 = vmatpush1.msra.mxu0 0.0
    %711 = vmatprep.subr.mxu0 0.0
    %712 = vmatpush1.msra.mxu0 0.0
    %713 = vmatprep.subr.mxu0 0.0
    %714 = vmatpush1.msra.mxu0 0.0
    %715 = vmatprep.subr.mxu0 0.0
    %716 = vmatpush1.msra.mxu0 0.0
    %717 = vmatprep.subr.mxu0 0.0
    %718 = vmatpush1.msra.mxu0 0.0
    %719 = vmatprep.subr.mxu0 0.0
    %720 = vmatpush1.msra.mxu0 0.0
    %721 = vmatprep.subr.mxu0 0.0
    %722 = vmatpush1.msra.mxu0 0.0
    %723 = vmatprep.subr.mxu0 0.0
    %724 = vmatpush1.msra.mxu0 0.0
    %725 = vmatprep.subr.mxu0 0.0
    %726 = vmatpush1.msra.mxu0 %v277
    %727 = vmatprep.subr.mxu0 0.0
    %728 = vmatpush1.msra.mxu0 %v276
    %729 = vmatprep.subr.mxu0 0.0
    %730 = vmatpush1.msra.mxu0 %v275
    %731 = vmatprep.subr.mxu0 0.0
    %732 = vmatpush1.msra.mxu0 %v274
    %733 = vmatprep.subr.mxu0 0.0
    %734 = vmatpush2.msra.mxu0 0.0
    %735 = vmatprep.subr.mxu0 0.0
    %736 = vmatpush2.msra.mxu0 0.0
    %737 = vmatprep.subr.mxu0 0.0
    %738 = vmatpush2.msra.mxu0 0.0
    %739 = vmatprep.subr.mxu0 0.0
    %740 = vmatpush2.msra.mxu0 0.0
    %741 = vmatprep.subr.mxu0 0.0
    %742 = vmatpush2.msra.mxu0 0.0
    %743 = vmatprep.subr.mxu0 0.0
    %744 = vmatpush2.msra.mxu0 0.0
    %745 = vmatprep.subr.mxu0 0.0
    %746 = vmatpush2.msra.mxu0 0.0
    %747 = vmatprep.subr.mxu0 0.0
    %748 = vmatpush2.msra.mxu0 0.0
    %749 = vmatprep.subr.mxu0 0.0
    %750 = vmatpush2.msra.mxu0 0.0
    %751 = vmatprep.subr.mxu0 0.0
    %752 = vmatpush2.msra.mxu0 0.0
    %753 = vmatprep.subr.mxu0 0.0
    %754 = vmatpush2.msra.mxu0 0.0
    %755 = vmatprep.subr.mxu0 0.0
    %756 = vmatpush2.msra.mxu0 0.0
    %757 = vmatprep.subr.mxu0 0.0
    %758 = vmatpush2.msra.mxu0 0.0
    %759 = vmatprep.subr.mxu0 0.0
    %760 = vmatpush2.msra.mxu0 0.0
    %761 = vmatprep.subr.mxu0 0.0
    %762 = vmatpush2.msra.mxu0 0.0
    %763 = vmatprep.subr.mxu0 0.0
    %764 = vmatpush2.msra.mxu0 0.0
    %765 = vmatprep.mubr.f32.mxu0 0.0
    %766 = vmatmul.mubr.f32.gmra.mxu0 %v699
    %v767 = vpop.f32.mrf.mxu0
    %v768 = vadd.f32 0.0, %v767
    %v769 = vpop.f32.mrf.mxu0
    %770 = vdwg.mxu0
    %v771 = vadd.f32 %v698, %v768
    %s772 = scalar_lea.vmem [#allocation3], 40
    %v773 = vld [vmem:[%s772] sm:$0xff]
    %v774 = vsel %vm284, %v693, 0
    %776 = vmatprep.subr.mxu0 0.0
    %777 = vmatpush1.msra.mxu0 0.0
    %778 = vmatprep.subr.mxu0 0.0
    %779 = vmatpush1.msra.mxu0 0.0
    %780 = vmatprep.subr.mxu0 0.0
    %781 = vmatpush1.msra.mxu0 0.0
    %782 = vmatprep.subr.mxu0 0.0
    %783 = vmatpush1.msra.mxu0 0.0
    %784 = vmatprep.subr.mxu0 0.0
    %785 = vmatpush1.msra.mxu0 0.0
    %786 = vmatprep.subr.mxu0 0.0
    %787 = vmatpush1.msra.mxu0 0.0
    %788 = vmatprep.subr.mxu0 0.0
    %789 = vmatpush1.msra.mxu0 0.0
    %790 = vmatprep.subr.mxu0 0.0
    %791 = vmatpush1.msra.mxu0 0.0
    %792 = vmatprep.subr.mxu0 0.0
    %793 = vmatpush1.msra.mxu0 0.0
    %794 = vmatprep.subr.mxu0 0.0
    %795 = vmatpush1.msra.mxu0 0.0
    %796 = vmatprep.subr.mxu0 0.0
    %797 = vmatpush1.msra.mxu0 0.0
    %798 = vmatprep.subr.mxu0 0.0
    %799 = vmatpush1.msra.mxu0 0.0
    %800 = vmatprep.subr.mxu0 0.0
    %801 = vmatpush1.msra.mxu0 %v282
    %802 = vmatprep.subr.mxu0 0.0
    %803 = vmatpush1.msra.mxu0 %v281
    %804 = vmatprep.subr.mxu0 0.0
    %805 = vmatpush1.msra.mxu0 %v280
    %806 = vmatprep.subr.mxu0 0.0
    %807 = vmatpush1.msra.mxu0 %v279
    %808 = vmatprep.subr.mxu0 0.0
    %809 = vmatpush2.msra.mxu0 0.0
    %810 = vmatprep.subr.mxu0 0.0
    %811 = vmatpush2.msra.mxu0 0.0
    %812 = vmatprep.subr.mxu0 0.0
    %813 = vmatpush2.msra.mxu0 0.0
    %814 = vmatprep.subr.mxu0 0.0
    %815 = vmatpush2.msra.mxu0 0.0
    %816 = vmatprep.subr.mxu0 0.0
    %817 = vmatpush2.msra.mxu0 0.0
    %818 = vmatprep.subr.mxu0 0.0
    %819 = vmatpush2.msra.mxu0 0.0
    %820 = vmatprep.subr.mxu0 0.0
    %821 = vmatpush2.msra.mxu0 0.0
    %822 = vmatprep.subr.mxu0 0.0
    %823 = vmatpush2.msra.mxu0 0.0
    %824 = vmatprep.subr.mxu0 0.0
    %825 = vmatpush2.msra.mxu0 0.0
    %826 = vmatprep.subr.mxu0 0.0
    %827 = vmatpush2.msra.mxu0 0.0
    %828 = vmatprep.subr.mxu0 0.0
    %829 = vmatpush2.msra.mxu0 0.0
    %830 = vmatprep.subr.mxu0 0.0
    %831 = vmatpush2.msra.mxu0 0.0
    %832 = vmatprep.subr.mxu0 0.0
    %833 = vmatpush2.msra.mxu0 0.0
    %834 = vmatprep.subr.mxu0 0.0
    %835 = vmatpush2.msra.mxu0 0.0
    %836 = vmatprep.subr.mxu0 0.0
    %837 = vmatpush2.msra.mxu0 0.0
    %838 = vmatprep.subr.mxu0 0.0
    %839 = vmatpush2.msra.mxu0 0.0
    %840 = vmatprep.mubr.f32.mxu0 0.0
    %841 = vmatmul.mubr.f32.gmra.mxu0 %v774
    %v842 = vpop.f32.mrf.mxu0
    %v843 = vadd.f32 0.0, %v842
    %v844 = vpop.f32.mrf.mxu0
    %845 = vdwg.mxu0
    %v846 = vadd.f32 %v773, %v843
    %v847 = vsub.f32 0.0, %v771
    %v848 = vmul.f32 %v847, 1.442695
    %v849 = vpow.pop %v848
    %v850 = vadd.f32 %v849, 1.0
    %v851 = vrcp.pop %v850
    %v852 = vtanh.pop %v771
    %v853 = vmul.f32 %v851, %v655
    %855 = vrot.lane.b32.xlu0 %v852, 64
    %v856 = vpop.permute.xlu0 %855
    %v858 = vmul.f32 %v851, %v856
    %860 = vrot.lane.b32.xlu0 %v858, 32
    %v861 = vpop.permute.xlu0 %860
    %v863 = vadd.f32 %v853, %v861
    %v864 = vtanh.pop %v863
    %866 = vrot.lane.b32.xlu0 %v864, 64
    %v867 = vpop.permute.xlu0 %866
    %v869 = vmul.f32 %v851, %v867
    %v870 = vsub.f32 0.0, %v846
    %v871 = vmul.f32 %v870, 1.442695
    %v872 = vpow.pop %v871
    %v873 = vadd.f32 %v872, 1.0
    %v874 = vrcp.pop %v873
    %v875 = vtanh.pop %v846
    %v876 = vmul.f32 %v874, %v678
    %878 = vrot.lane.b32.xlu0 %v875, 64
    %v879 = vpop.permute.xlu0 %878
    %v881 = vmul.f32 %v874, %v879
    %883 = vrot.lane.b32.xlu0 %v881, 32
    %v884 = vpop.permute.xlu0 %883
    %v886 = vadd.f32 %v876, %v884
    %v887 = vtanh.pop %v886
    %889 = vrot.lane.b32.xlu0 %v887, 64
    %v890 = vpop.permute.xlu0 %889
    %v892 = vmul.f32 %v874, %v890
    %894 = vrot.lane.b32.xlu0 %v869, 32
    %v895 = vpop.permute.xlu0 %894
    %s897 = scalar_lea.vmem [#allocation10], 16
    %898 = vst.msk [vmem:[%s897] sm:$0xff] %vm284, %v895
    %900 = vrot.lane.b32.xlu0 %v892, 32
    %v901 = vpop.permute.xlu0 %900
    %s903 = scalar_lea.vmem [#allocation10], 104
    %904 = vst.msk [vmem:[%s903] sm:$0xff] %vm284, %v901
    %s905 = scalar_lea.vmem [#allocation2], 24
    %v906 = vld [vmem:[%s905] sm:$0xff]
    %v907 = vsel %vm284, %v895, 0
    %909 = vmatprep.subr.mxu0 0.0
    %910 = vmatpush1.msra.mxu0 0.0
    %911 = vmatprep.subr.mxu0 0.0
    %912 = vmatpush1.msra.mxu0 0.0
    %913 = vmatprep.subr.mxu0 0.0
    %914 = vmatpush1.msra.mxu0 0.0
    %915 = vmatprep.subr.mxu0 0.0
    %916 = vmatpush1.msra.mxu0 0.0
    %917 = vmatprep.subr.mxu0 0.0
    %918 = vmatpush1.msra.mxu0 0.0
    %919 = vmatprep.subr.mxu0 0.0
    %920 = vmatpush1.msra.mxu0 0.0
    %921 = vmatprep.subr.mxu0 0.0
    %922 = vmatpush1.msra.mxu0 0.0
    %923 = vmatprep.subr.mxu0 0.0
    %924 = vmatpush1.msra.mxu0 0.0
    %925 = vmatprep.subr.mxu0 0.0
    %926 = vmatpush1.msra.mxu0 0.0
    %927 = vmatprep.subr.mxu0 0.0
    %928 = vmatpush1.msra.mxu0 0.0
    %929 = vmatprep.subr.mxu0 0.0
    %930 = vmatpush1.msra.mxu0 0.0
    %931 = vmatprep.subr.mxu0 0.0
    %932 = vmatpush1.msra.mxu0 0.0
    %933 = vmatprep.subr.mxu0 0.0
    %934 = vmatpush1.msra.mxu0 %v277
    %935 = vmatprep.subr.mxu0 0.0
    %936 = vmatpush1.msra.mxu0 %v276
    %937 = vmatprep.subr.mxu0 0.0
    %938 = vmatpush1.msra.mxu0 %v275
    %939 = vmatprep.subr.mxu0 0.0
    %940 = vmatpush1.msra.mxu0 %v274
    %941 = vmatprep.subr.mxu0 0.0
    %942 = vmatpush2.msra.mxu0 0.0
    %943 = vmatprep.subr.mxu0 0.0
    %944 = vmatpush2.msra.mxu0 0.0
    %945 = vmatprep.subr.mxu0 0.0
    %946 = vmatpush2.msra.mxu0 0.0
    %947 = vmatprep.subr.mxu0 0.0
    %948 = vmatpush2.msra.mxu0 0.0
    %949 = vmatprep.subr.mxu0 0.0
    %950 = vmatpush2.msra.mxu0 0.0
    %951 = vmatprep.subr.mxu0 0.0
    %952 = vmatpush2.msra.mxu0 0.0
    %953 = vmatprep.subr.mxu0 0.0
    %954 = vmatpush2.msra.mxu0 0.0
    %955 = vmatprep.subr.mxu0 0.0
    %956 = vmatpush2.msra.mxu0 0.0
    %957 = vmatprep.subr.mxu0 0.0
    %958 = vmatpush2.msra.mxu0 0.0
    %959 = vmatprep.subr.mxu0 0.0
    %960 = vmatpush2.msra.mxu0 0.0
    %961 = vmatprep.subr.mxu0 0.0
    %962 = vmatpush2.msra.mxu0 0.0
    %963 = vmatprep.subr.mxu0 0.0
    %964 = vmatpush2.msra.mxu0 0.0
    %965 = vmatprep.subr.mxu0 0.0
    %966 = vmatpush2.msra.mxu0 0.0
    %967 = vmatprep.subr.mxu0 0.0
    %968 = vmatpush2.msra.mxu0 0.0
    %969 = vmatprep.subr.mxu0 0.0
    %970 = vmatpush2.msra.mxu0 0.0
    %971 = vmatprep.subr.mxu0 0.0
    %972 = vmatpush2.msra.mxu0 0.0
    %973 = vmatprep.mubr.f32.mxu0 0.0
    %974 = vmatmul.mubr.f32.gmra.mxu0 %v907
    %v975 = vpop.f32.mrf.mxu0
    %v976 = vadd.f32 0.0, %v975
    %v977 = vpop.f32.mrf.mxu0
    %978 = vdwg.mxu0
    %v979 = vadd.f32 %v906, %v976
    %s980 = scalar_lea.vmem [#allocation3], 32
    %v981 = vld [vmem:[%s980] sm:$0xff]
    %v982 = vsel %vm284, %v901, 0
    %984 = vmatprep.subr.mxu0 0.0
    %985 = vmatpush1.msra.mxu0 0.0
    %986 = vmatprep.subr.mxu0 0.0
    %987 = vmatpush1.msra.mxu0 0.0
    %988 = vmatprep.subr.mxu0 0.0
    %989 = vmatpush1.msra.mxu0 0.0
    %990 = vmatprep.subr.mxu0 0.0
    %991 = vmatpush1.msra.mxu0 0.0
    %992 = vmatprep.subr.mxu0 0.0
    %993 = vmatpush1.msra.mxu0 0.0
    %994 = vmatprep.subr.mxu0 0.0
    %995 = vmatpush1.msra.mxu0 0.0
    %996 = vmatprep.subr.mxu0 0.0
    %997 = vmatpush1.msra.mxu0 0.0
    %998 = vmatprep.subr.mxu0 0.0
    %999 = vmatpush1.msra.mxu0 0.0
    %1000 = vmatprep.subr.mxu0 0.0
    %1001 = vmatpush1.msra.mxu0 0.0
    %1002 = vmatprep.subr.mxu0 0.0
    %1003 = vmatpush1.msra.mxu0 0.0
    %1004 = vmatprep.subr.mxu0 0.0
    %1005 = vmatpush1.msra.mxu0 0.0
    %1006 = vmatprep.subr.mxu0 0.0
    %1007 = vmatpush1.msra.mxu0 0.0
    %1008 = vmatprep.subr.mxu0 0.0
    %1009 = vmatpush1.msra.mxu0 %v282
    %1010 = vmatprep.subr.mxu0 0.0
    %1011 = vmatpush1.msra.mxu0 %v281
    %1012 = vmatprep.subr.mxu0 0.0
    %1013 = vmatpush1.msra.mxu0 %v280
    %1014 = vmatprep.subr.mxu0 0.0
    %1015 = vmatpush1.msra.mxu0 %v279
    %1016 = vmatprep.subr.mxu0 0.0
    %1017 = vmatpush2.msra.mxu0 0.0
    %1018 = vmatprep.subr.mxu0 0.0
    %1019 = vmatpush2.msra.mxu0 0.0
    %1020 = vmatprep.subr.mxu0 0.0
    %1021 = vmatpush2.msra.mxu0 0.0
    %1022 = vmatprep.subr.mxu0 0.0
    %1023 = vmatpush2.msra.mxu0 0.0
    %1024 = vmatprep.subr.mxu0 0.0
    %1025 = vmatpush2.msra.mxu0 0.0
    %1026 = vmatprep.subr.mxu0 0.0
    %1027 = vmatpush2.msra.mxu0 0.0
    %1028 = vmatprep.subr.mxu0 0.0
    %1029 = vmatpush2.msra.mxu0 0.0
    %1030 = vmatprep.subr.mxu0 0.0
    %1031 = vmatpush2.msra.mxu0 0.0
    %1032 = vmatprep.subr.mxu0 0.0
    %1033 = vmatpush2.msra.mxu0 0.0
    %1034 = vmatprep.subr.mxu0 0.0
    %1035 = vmatpush2.msra.mxu0 0.0
    %1036 = vmatprep.subr.mxu0 0.0
    %1037 = vmatpush2.msra.mxu0 0.0
    %1038 = vmatprep.subr.mxu0 0.0
    %1039 = vmatpush2.msra.mxu0 0.0
    %1040 = vmatprep.subr.mxu0 0.0
    %1041 = vmatpush2.msra.mxu0 0.0
    %1042 = vmatprep.subr.mxu0 0.0
    %1043 = vmatpush2.msra.mxu0 0.0
    %1044 = vmatprep.subr.mxu0 0.0
    %1045 = vmatpush2.msra.mxu0 0.0
    %1046 = vmatprep.subr.mxu0 0.0
    %1047 = vmatpush2.msra.mxu0 0.0
    %1048 = vmatprep.mubr.f32.mxu0 0.0
    %1049 = vmatmul.mubr.f32.gmra.mxu0 %v982
    %v1050 = vpop.f32.mrf.mxu0
    %v1051 = vadd.f32 0.0, %v1050
    %v1052 = vpop.f32.mrf.mxu0
    %1053 = vdwg.mxu0
    %v1054 = vadd.f32 %v981, %v1051
    %v1055 = vsub.f32 0.0, %v979
    %v1056 = vmul.f32 %v1055, 1.442695
    %v1057 = vpow.pop %v1056
    %v1058 = vadd.f32 %v1057, 1.0
    %v1059 = vrcp.pop %v1058
    %v1060 = vtanh.pop %v979
    %v1061 = vmul.f32 %v1059, %v863
    %1063 = vrot.lane.b32.xlu0 %v1060, 64
    %v1064 = vpop.permute.xlu0 %1063
    %v1066 = vmul.f32 %v1059, %v1064
    %1068 = vrot.lane.b32.xlu0 %v1066, 32
    %v1069 = vpop.permute.xlu0 %1068
    %v1071 = vadd.f32 %v1061, %v1069
    %v1072 = vtanh.pop %v1071
    %1074 = vrot.lane.b32.xlu0 %v1072, 64
    %v1075 = vpop.permute.xlu0 %1074
    %v1077 = vmul.f32 %v1059, %v1075
    %v1078 = vsub.f32 0.0, %v1054
    %v1079 = vmul.f32 %v1078, 1.442695
    %v1080 = vpow.pop %v1079
    %v1081 = vadd.f32 %v1080, 1.0
    %v1082 = vrcp.pop %v1081
    %v1083 = vtanh.pop %v1054
    %v1084 = vmul.f32 %v1082, %v886
    %1086 = vrot.lane.b32.xlu0 %v1083, 64
    %v1087 = vpop.permute.xlu0 %1086
    %v1089 = vmul.f32 %v1082, %v1087
    %1091 = vrot.lane.b32.xlu0 %v1089, 32
    %v1092 = vpop.permute.xlu0 %1091
    %v1094 = vadd.f32 %v1084, %v1092
    %v1095 = vtanh.pop %v1094
    %1097 = vrot.lane.b32.xlu0 %v1095, 64
    %v1098 = vpop.permute.xlu0 %1097
    %v1100 = vmul.f32 %v1082, %v1098
    %1102 = vrot.lane.b32.xlu0 %v1077, 32
    %v1103 = vpop.permute.xlu0 %1102
    %s1105 = scalar_lea.vmem [#allocation10], 24
    %1106 = vst.msk [vmem:[%s1105] sm:$0xff] %vm284, %v1103
    %1108 = vrot.lane.b32.xlu0 %v1100, 32
    %v1109 = vpop.permute.xlu0 %1108
    %s1111 = scalar_lea.vmem [#allocation10], 96
    %1112 = vst.msk [vmem:[%s1111] sm:$0xff] %vm284, %v1109
    %s1113 = scalar_lea.vmem [#allocation2], 32
    %v1114 = vld [vmem:[%s1113] sm:$0xff]
    %v1115 = vsel %vm284, %v1103, 0
    %1117 = vmatprep.subr.mxu0 0.0
    %1118 = vmatpush1.msra.mxu0 0.0
    %1119 = vmatprep.subr.mxu0 0.0
    %1120 = vmatpush1.msra.mxu0 0.0
    %1121 = vmatprep.subr.mxu0 0.0
    %1122 = vmatpush1.msra.mxu0 0.0
    %1123 = vmatprep.subr.mxu0 0.0
    %1124 = vmatpush1.msra.mxu0 0.0
    %1125 = vmatprep.subr.mxu0 0.0
    %1126 = vmatpush1.msra.mxu0 0.0
    %1127 = vmatprep.subr.mxu0 0.0
    %1128 = vmatpush1.msra.mxu0 0.0
    %1129 = vmatprep.subr.mxu0 0.0
    %1130 = vmatpush1.msra.mxu0 0.0
    %1131 = vmatprep.subr.mxu0 0.0
    %1132 = vmatpush1.msra.mxu0 0.0
    %1133 = vmatprep.subr.mxu0 0.0
    %1134 = vmatpush1.msra.mxu0 0.0
    %1135 = vmatprep.subr.mxu0 0.0
    %1136 = vmatpush1.msra.mxu0 0.0
    %1137 = vmatprep.subr.mxu0 0.0
    %1138 = vmatpush1.msra.mxu0 0.0
    %1139 = vmatprep.subr.mxu0 0.0
    %1140 = vmatpush1.msra.mxu0 0.0
    %1141 = vmatprep.subr.mxu0 0.0
    %1142 = vmatpush1.msra.mxu0 %v277
    %1143 = vmatprep.subr.mxu0 0.0
    %1144 = vmatpush1.msra.mxu0 %v276
    %1145 = vmatprep.subr.mxu0 0.0
    %1146 = vmatpush1.msra.mxu0 %v275
    %1147 = vmatprep.subr.mxu0 0.0
    %1148 = vmatpush1.msra.mxu0 %v274
    %1149 = vmatprep.subr.mxu0 0.0
    %1150 = vmatpush2.msra.mxu0 0.0
    %1151 = vmatprep.subr.mxu0 0.0
    %1152 = vmatpush2.msra.mxu0 0.0
    %1153 = vmatprep.subr.mxu0 0.0
    %1154 = vmatpush2.msra.mxu0 0.0
    %1155 = vmatprep.subr.mxu0 0.0
    %1156 = vmatpush2.msra.mxu0 0.0
    %1157 = vmatprep.subr.mxu0 0.0
    %1158 = vmatpush2.msra.mxu0 0.0
    %1159 = vmatprep.subr.mxu0 0.0
    %1160 = vmatpush2.msra.mxu0 0.0
    %1161 = vmatprep.subr.mxu0 0.0
    %1162 = vmatpush2.msra.mxu0 0.0
    %1163 = vmatprep.subr.mxu0 0.0
    %1164 = vmatpush2.msra.mxu0 0.0
    %1165 = vmatprep.subr.mxu0 0.0
    %1166 = vmatpush2.msra.mxu0 0.0
    %1167 = vmatprep.subr.mxu0 0.0
    %1168 = vmatpush2.msra.mxu0 0.0
    %1169 = vmatprep.subr.mxu0 0.0
    %1170 = vmatpush2.msra.mxu0 0.0
    %1171 = vmatprep.subr.mxu0 0.0
    %1172 = vmatpush2.msra.mxu0 0.0
    %1173 = vmatprep.subr.mxu0 0.0
    %1174 = vmatpush2.msra.mxu0 0.0
    %1175 = vmatprep.subr.mxu0 0.0
    %1176 = vmatpush2.msra.mxu0 0.0
    %1177 = vmatprep.subr.mxu0 0.0
    %1178 = vmatpush2.msra.mxu0 0.0
    %1179 = vmatprep.subr.mxu0 0.0
    %1180 = vmatpush2.msra.mxu0 0.0
    %1181 = vmatprep.mubr.f32.mxu0 0.0
    %1182 = vmatmul.mubr.f32.gmra.mxu0 %v1115
    %v1183 = vpop.f32.mrf.mxu0
    %v1184 = vadd.f32 0.0, %v1183
    %v1185 = vpop.f32.mrf.mxu0
    %1186 = vdwg.mxu0
    %v1187 = vadd.f32 %v1114, %v1184
    %s1188 = scalar_lea.vmem [#allocation3], 24
    %v1189 = vld [vmem:[%s1188] sm:$0xff]
    %v1190 = vsel %vm284, %v1109, 0
    %1192 = vmatprep.subr.mxu0 0.0
    %1193 = vmatpush1.msra.mxu0 0.0
    %1194 = vmatprep.subr.mxu0 0.0
    %1195 = vmatpush1.msra.mxu0 0.0
    %1196 = vmatprep.subr.mxu0 0.0
    %1197 = vmatpush1.msra.mxu0 0.0
    %1198 = vmatprep.subr.mxu0 0.0
    %1199 = vmatpush1.msra.mxu0 0.0
    %1200 = vmatprep.subr.mxu0 0.0
    %1201 = vmatpush1.msra.mxu0 0.0
    %1202 = vmatprep.subr.mxu0 0.0
    %1203 = vmatpush1.msra.mxu0 0.0
    %1204 = vmatprep.subr.mxu0 0.0
    %1205 = vmatpush1.msra.mxu0 0.0
    %1206 = vmatprep.subr.mxu0 0.0
    %1207 = vmatpush1.msra.mxu0 0.0
    %1208 = vmatprep.subr.mxu0 0.0
    %1209 = vmatpush1.msra.mxu0 0.0
    %1210 = vmatprep.subr.mxu0 0.0
    %1211 = vmatpush1.msra.mxu0 0.0
    %1212 = vmatprep.subr.mxu0 0.0
    %1213 = vmatpush1.msra.mxu0 0.0
    %1214 = vmatprep.subr.mxu0 0.0
    %1215 = vmatpush1.msra.mxu0 0.0
    %1216 = vmatprep.subr.mxu0 0.0
    %1217 = vmatpush1.msra.mxu0 %v282
    %1218 = vmatprep.subr.mxu0 0.0
    %1219 = vmatpush1.msra.mxu0 %v281
    %1220 = vmatprep.subr.mxu0 0.0
    %1221 = vmatpush1.msra.mxu0 %v280
    %1222 = vmatprep.subr.mxu0 0.0
    %1223 = vmatpush1.msra.mxu0 %v279
    %1224 = vmatprep.subr.mxu0 0.0
    %1225 = vmatpush2.msra.mxu0 0.0
    %1226 = vmatprep.subr.mxu0 0.0
    %1227 = vmatpush2.msra.mxu0 0.0
    %1228 = vmatprep.subr.mxu0 0.0
    %1229 = vmatpush2.msra.mxu0 0.0
    %1230 = vmatprep.subr.mxu0 0.0
    %1231 = vmatpush2.msra.mxu0 0.0
    %1232 = vmatprep.subr.mxu0 0.0
    %1233 = vmatpush2.msra.mxu0 0.0
    %1234 = vmatprep.subr.mxu0 0.0
    %1235 = vmatpush2.msra.mxu0 0.0
    %1236 = vmatprep.subr.mxu0 0.0
    %1237 = vmatpush2.msra.mxu0 0.0
    %1238 = vmatprep.subr.mxu0 0.0
    %1239 = vmatpush2.msra.mxu0 0.0
    %1240 = vmatprep.subr.mxu0 0.0
    %1241 = vmatpush2.msra.mxu0 0.0
    %1242 = vmatprep.subr.mxu0 0.0
    %1243 = vmatpush2.msra.mxu0 0.0
    %1244 = vmatprep.subr.mxu0 0.0
    %1245 = vmatpush2.msra.mxu0 0.0
    %1246 = vmatprep.subr.mxu0 0.0
    %1247 = vmatpush2.msra.mxu0 0.0
    %1248 = vmatprep.subr.mxu0 0.0
    %1249 = vmatpush2.msra.mxu0 0.0
    %1250 = vmatprep.subr.mxu0 0.0
    %1251 = vmatpush2.msra.mxu0 0.0
    %1252 = vmatprep.subr.mxu0 0.0
    %1253 = vmatpush2.msra.mxu0 0.0
    %1254 = vmatprep.subr.mxu0 0.0
    %1255 = vmatpush2.msra.mxu0 0.0
    %1256 = vmatprep.mubr.f32.mxu0 0.0
    %1257 = vmatmul.mubr.f32.gmra.mxu0 %v1190
    %v1258 = vpop.f32.mrf.mxu0
    %v1259 = vadd.f32 0.0, %v1258
    %v1260 = vpop.f32.mrf.mxu0
    %1261 = vdwg.mxu0
    %v1262 = vadd.f32 %v1189, %v1259
    %v1263 = vsub.f32 0.0, %v1187
    %v1264 = vmul.f32 %v1263, 1.442695
    %v1265 = vpow.pop %v1264
    %v1266 = vadd.f32 %v1265, 1.0
    %v1267 = vrcp.pop %v1266
    %v1268 = vtanh.pop %v1187
    %v1269 = vmul.f32 %v1267, %v1071
    %1271 = vrot.lane.b32.xlu0 %v1268, 64
    %v1272 = vpop.permute.xlu0 %1271
    %v1274 = vmul.f32 %v1267, %v1272
    %1276 = vrot.lane.b32.xlu0 %v1274, 32
    %v1277 = vpop.permute.xlu0 %1276
    %v1279 = vadd.f32 %v1269, %v1277
    %v1280 = vtanh.pop %v1279
    %1282 = vrot.lane.b32.xlu0 %v1280, 64
    %v1283 = vpop.permute.xlu0 %1282
    %v1285 = vmul.f32 %v1267, %v1283
    %v1286 = vsub.f32 0.0, %v1262
    %v1287 = vmul.f32 %v1286, 1.442695
    %v1288 = vpow.pop %v1287
    %v1289 = vadd.f32 %v1288, 1.0
    %v1290 = vrcp.pop %v1289
    %v1291 = vtanh.pop %v1262
    %v1292 = vmul.f32 %v1290, %v1094
    %1294 = vrot.lane.b32.xlu0 %v1291, 64
    %v1295 = vpop.permute.xlu0 %1294
    %v1297 = vmul.f32 %v1290, %v1295
    %1299 = vrot.lane.b32.xlu0 %v1297, 32
    %v1300 = vpop.permute.xlu0 %1299
    %v1302 = vadd.f32 %v1292, %v1300
    %v1303 = vtanh.pop %v1302
    %1305 = vrot.lane.b32.xlu0 %v1303, 64
    %v1306 = vpop.permute.xlu0 %1305
    %v1308 = vmul.f32 %v1290, %v1306
    %1310 = vrot.lane.b32.xlu0 %v1285, 32
    %v1311 = vpop.permute.xlu0 %1310
    %s1313 = scalar_lea.vmem [#allocation10], 32
    %1314 = vst.msk [vmem:[%s1313] sm:$0xff] %vm284, %v1311
    %1316 = vrot.lane.b32.xlu0 %v1308, 32
    %v1317 = vpop.permute.xlu0 %1316
    %s1319 = scalar_lea.vmem [#allocation10], 88
    %1320 = vst.msk [vmem:[%s1319] sm:$0xff] %vm284, %v1317
    %s1321 = scalar_lea.vmem [#allocation2], 40
    %v1322 = vld [vmem:[%s1321] sm:$0xff]
    %v1323 = vsel %vm284, %v1311, 0
    %1325 = vmatprep.subr.mxu0 0.0
    %1326 = vmatpush1.msra.mxu0 0.0
    %1327 = vmatprep.subr.mxu0 0.0
    %1328 = vmatpush1.msra.mxu0 0.0
    %1329 = vmatprep.subr.mxu0 0.0
    %1330 = vmatpush1.msra.mxu0 0.0
    %1331 = vmatprep.subr.mxu0 0.0
    %1332 = vmatpush1.msra.mxu0 0.0
    %1333 = vmatprep.subr.mxu0 0.0
    %1334 = vmatpush1.msra.mxu0 0.0
    %1335 = vmatprep.subr.mxu0 0.0
    %1336 = vmatpush1.msra.mxu0 0.0
    %1337 = vmatprep.subr.mxu0 0.0
    %1338 = vmatpush1.msra.mxu0 0.0
    %1339 = vmatprep.subr.mxu0 0.0
    %1340 = vmatpush1.msra.mxu0 0.0
    %1341 = vmatprep.subr.mxu0 0.0
    %1342 = vmatpush1.msra.mxu0 0.0
    %1343 = vmatprep.subr.mxu0 0.0
    %1344 = vmatpush1.msra.mxu0 0.0
    %1345 = vmatprep.subr.mxu0 0.0
    %1346 = vmatpush1.msra.mxu0 0.0
    %1347 = vmatprep.subr.mxu0 0.0
    %1348 = vmatpush1.msra.mxu0 0.0
    %1349 = vmatprep.subr.mxu0 0.0
    %1350 = vmatpush1.msra.mxu0 %v277
    %1351 = vmatprep.subr.mxu0 0.0
    %1352 = vmatpush1.msra.mxu0 %v276
    %1353 = vmatprep.subr.mxu0 0.0
    %1354 = vmatpush1.msra.mxu0 %v275
    %1355 = vmatprep.subr.mxu0 0.0
    %1356 = vmatpush1.msra.mxu0 %v274
    %1357 = vmatprep.subr.mxu0 0.0
    %1358 = vmatpush2.msra.mxu0 0.0
    %1359 = vmatprep.subr.mxu0 0.0
    %1360 = vmatpush2.msra.mxu0 0.0
    %1361 = vmatprep.subr.mxu0 0.0
    %1362 = vmatpush2.msra.mxu0 0.0
    %1363 = vmatprep.subr.mxu0 0.0
    %1364 = vmatpush2.msra.mxu0 0.0
    %1365 = vmatprep.subr.mxu0 0.0
    %1366 = vmatpush2.msra.mxu0 0.0
    %1367 = vmatprep.subr.mxu0 0.0
    %1368 = vmatpush2.msra.mxu0 0.0
    %1369 = vmatprep.subr.mxu0 0.0
    %1370 = vmatpush2.msra.mxu0 0.0
    %1371 = vmatprep.subr.mxu0 0.0
    %1372 = vmatpush2.msra.mxu0 0.0
    %1373 = vmatprep.subr.mxu0 0.0
    %1374 = vmatpush2.msra.mxu0 0.0
    %1375 = vmatprep.subr.mxu0 0.0
    %1376 = vmatpush2.msra.mxu0 0.0
    %1377 = vmatprep.subr.mxu0 0.0
    %1378 = vmatpush2.msra.mxu0 0.0
    %1379 = vmatprep.subr.mxu0 0.0
    %1380 = vmatpush2.msra.mxu0 0.0
    %1381 = vmatprep.subr.mxu0 0.0
    %1382 = vmatpush2.msra.mxu0 0.0
    %1383 = vmatprep.subr.mxu0 0.0
    %1384 = vmatpush2.msra.mxu0 0.0
    %1385 = vmatprep.subr.mxu0 0.0
    %1386 = vmatpush2.msra.mxu0 0.0
    %1387 = vmatprep.subr.mxu0 0.0
    %1388 = vmatpush2.msra.mxu0 0.0
    %1389 = vmatprep.mubr.f32.mxu0 0.0
    %1390 = vmatmul.mubr.f32.gmra.mxu0 %v1323
    %v1391 = vpop.f32.mrf.mxu0
    %v1392 = vadd.f32 0.0, %v1391
    %v1393 = vpop.f32.mrf.mxu0
    %1394 = vdwg.mxu0
    %v1395 = vadd.f32 %v1322, %v1392
    %s1396 = scalar_lea.vmem [#allocation3], 16
    %v1397 = vld [vmem:[%s1396] sm:$0xff]
    %v1398 = vsel %vm284, %v1317, 0
    %1400 = vmatprep.subr.mxu0 0.0
    %1401 = vmatpush1.msra.mxu0 0.0
    %1402 = vmatprep.subr.mxu0 0.0
    %1403 = vmatpush1.msra.mxu0 0.0
    %1404 = vmatprep.subr.mxu0 0.0
    %1405 = vmatpush1.msra.mxu0 0.0
    %1406 = vmatprep.subr.mxu0 0.0
    %1407 = vmatpush1.msra.mxu0 0.0
    %1408 = vmatprep.subr.mxu0 0.0
    %1409 = vmatpush1.msra.mxu0 0.0
    %1410 = vmatprep.subr.mxu0 0.0
    %1411 = vmatpush1.msra.mxu0 0.0
    %1412 = vmatprep.subr.mxu0 0.0
    %1413 = vmatpush1.msra.mxu0 0.0
    %1414 = vmatprep.subr.mxu0 0.0
    %1415 = vmatpush1.msra.mxu0 0.0
    %1416 = vmatprep.subr.mxu0 0.0
    %1417 = vmatpush1.msra.mxu0 0.0
    %1418 = vmatprep.subr.mxu0 0.0
    %1419 = vmatpush1.msra.mxu0 0.0
    %1420 = vmatprep.subr.mxu0 0.0
    %1421 = vmatpush1.msra.mxu0 0.0
    %1422 = vmatprep.subr.mxu0 0.0
    %1423 = vmatpush1.msra.mxu0 0.0
    %1424 = vmatprep.subr.mxu0 0.0
    %1425 = vmatpush1.msra.mxu0 %v282
    %1426 = vmatprep.subr.mxu0 0.0
    %1427 = vmatpush1.msra.mxu0 %v281
    %1428 = vmatprep.subr.mxu0 0.0
    %1429 = vmatpush1.msra.mxu0 %v280
    %1430 = vmatprep.subr.mxu0 0.0
    %1431 = vmatpush1.msra.mxu0 %v279
    %1432 = vmatprep.subr.mxu0 0.0
    %1433 = vmatpush2.msra.mxu0 0.0
    %1434 = vmatprep.subr.mxu0 0.0
    %1435 = vmatpush2.msra.mxu0 0.0
    %1436 = vmatprep.subr.mxu0 0.0
    %1437 = vmatpush2.msra.mxu0 0.0
    %1438 = vmatprep.subr.mxu0 0.0
    %1439 = vmatpush2.msra.mxu0 0.0
    %1440 = vmatprep.subr.mxu0 0.0
    %1441 = vmatpush2.msra.mxu0 0.0
    %1442 = vmatprep.subr.mxu0 0.0
    %1443 = vmatpush2.msra.mxu0 0.0
    %1444 = vmatprep.subr.mxu0 0.0
    %1445 = vmatpush2.msra.mxu0 0.0
    %1446 = vmatprep.subr.mxu0 0.0
    %1447 = vmatpush2.msra.mxu0 0.0
    %1448 = vmatprep.subr.mxu0 0.0
    %1449 = vmatpush2.msra.mxu0 0.0
    %1450 = vmatprep.subr.mxu0 0.0
    %1451 = vmatpush2.msra.mxu0 0.0
    %1452 = vmatprep.subr.mxu0 0.0
    %1453 = vmatpush2.msra.mxu0 0.0
    %1454 = vmatprep.subr.mxu0 0.0
    %1455 = vmatpush2.msra.mxu0 0.0
    %1456 = vmatprep.subr.mxu0 0.0
    %1457 = vmatpush2.msra.mxu0 0.0
    %1458 = vmatprep.subr.mxu0 0.0
    %1459 = vmatpush2.msra.mxu0 0.0
    %1460 = vmatprep.subr.mxu0 0.0
    %1461 = vmatpush2.msra.mxu0 0.0
    %1462 = vmatprep.subr.mxu0 0.0
    %1463 = vmatpush2.msra.mxu0 0.0
    %1464 = vmatprep.mubr.f32.mxu0 0.0
    %1465 = vmatmul.mubr.f32.gmra.mxu0 %v1398
    %v1466 = vpop.f32.mrf.mxu0
    %v1467 = vadd.f32 0.0, %v1466
    %v1468 = vpop.f32.mrf.mxu0
    %1469 = vdwg.mxu0
    %v1470 = vadd.f32 %v1397, %v1467
    %v1471 = vsub.f32 0.0, %v1395
    %v1472 = vmul.f32 %v1471, 1.442695
    %v1473 = vpow.pop %v1472
    %v1474 = vadd.f32 %v1473, 1.0
    %v1475 = vrcp.pop %v1474
    %v1476 = vtanh.pop %v1395
    %v1477 = vmul.f32 %v1475, %v1279
    %1479 = vrot.lane.b32.xlu0 %v1476, 64
    %v1480 = vpop.permute.xlu0 %1479
    %v1482 = vmul.f32 %v1475, %v1480
    %1484 = vrot.lane.b32.xlu0 %v1482, 32
    %v1485 = vpop.permute.xlu0 %1484
    %v1487 = vadd.f32 %v1477, %v1485
    %v1488 = vtanh.pop %v1487
    %1490 = vrot.lane.b32.xlu0 %v1488, 64
    %v1491 = vpop.permute.xlu0 %1490
    %v1493 = vmul.f32 %v1475, %v1491
    %v1494 = vsub.f32 0.0, %v1470
    %v1495 = vmul.f32 %v1494, 1.442695
    %v1496 = vpow.pop %v1495
    %v1497 = vadd.f32 %v1496, 1.0
    %v1498 = vrcp.pop %v1497
    %v1499 = vtanh.pop %v1470
    %v1500 = vmul.f32 %v1498, %v1302
    %1502 = vrot.lane.b32.xlu0 %v1499, 64
    %v1503 = vpop.permute.xlu0 %1502
    %v1505 = vmul.f32 %v1498, %v1503
    %1507 = vrot.lane.b32.xlu0 %v1505, 32
    %v1508 = vpop.permute.xlu0 %1507
    %v1510 = vadd.f32 %v1500, %v1508
    %v1511 = vtanh.pop %v1510
    %1513 = vrot.lane.b32.xlu0 %v1511, 64
    %v1514 = vpop.permute.xlu0 %1513
    %v1516 = vmul.f32 %v1498, %v1514
    %1518 = vrot.lane.b32.xlu0 %v1493, 32
    %v1519 = vpop.permute.xlu0 %1518
    %s1521 = scalar_lea.vmem [#allocation10], 40
    %1522 = vst.msk [vmem:[%s1521] sm:$0xff] %vm284, %v1519
    %1524 = vrot.lane.b32.xlu0 %v1516, 32
    %v1525 = vpop.permute.xlu0 %1524
    %s1527 = scalar_lea.vmem [#allocation10], 80
    %1528 = vst.msk [vmem:[%s1527] sm:$0xff] %vm284, %v1525
    %s1529 = scalar_lea.vmem [#allocation2], 48
    %v1530 = vld [vmem:[%s1529] sm:$0xff]
    %v1531 = vsel %vm284, %v1519, 0
    %1533 = vmatprep.subr.mxu0 0.0
    %1534 = vmatpush1.msra.mxu0 0.0
    %1535 = vmatprep.subr.mxu0 0.0
    %1536 = vmatpush1.msra.mxu0 0.0
    %1537 = vmatprep.subr.mxu0 0.0
    %1538 = vmatpush1.msra.mxu0 0.0
    %1539 = vmatprep.subr.mxu0 0.0
    %1540 = vmatpush1.msra.mxu0 0.0
    %1541 = vmatprep.subr.mxu0 0.0
    %1542 = vmatpush1.msra.mxu0 0.0
    %1543 = vmatprep.subr.mxu0 0.0
    %1544 = vmatpush1.msra.mxu0 0.0
    %1545 = vmatprep.subr.mxu0 0.0
    %1546 = vmatpush1.msra.mxu0 0.0
    %1547 = vmatprep.subr.mxu0 0.0
    %1548 = vmatpush1.msra.mxu0 0.0
    %1549 = vmatprep.subr.mxu0 0.0
    %1550 = vmatpush1.msra.mxu0 0.0
    %1551 = vmatprep.subr.mxu0 0.0
    %1552 = vmatpush1.msra.mxu0 0.0
    %1553 = vmatprep.subr.mxu0 0.0
    %1554 = vmatpush1.msra.mxu0 0.0
    %1555 = vmatprep.subr.mxu0 0.0
    %1556 = vmatpush1.msra.mxu0 0.0
    %1557 = vmatprep.subr.mxu0 0.0
    %1558 = vmatpush1.msra.mxu0 %v277
    %1559 = vmatprep.subr.mxu0 0.0
    %1560 = vmatpush1.msra.mxu0 %v276
    %1561 = vmatprep.subr.mxu0 0.0
    %1562 = vmatpush1.msra.mxu0 %v275
    %1563 = vmatprep.subr.mxu0 0.0
    %1564 = vmatpush1.msra.mxu0 %v274
    %1565 = vmatprep.subr.mxu0 0.0
    %1566 = vmatpush2.msra.mxu0 0.0
    %1567 = vmatprep.subr.mxu0 0.0
    %1568 = vmatpush2.msra.mxu0 0.0
    %1569 = vmatprep.subr.mxu0 0.0
    %1570 = vmatpush2.msra.mxu0 0.0
    %1571 = vmatprep.subr.mxu0 0.0
    %1572 = vmatpush2.msra.mxu0 0.0
    %1573 = vmatprep.subr.mxu0 0.0
    %1574 = vmatpush2.msra.mxu0 0.0
    %1575 = vmatprep.subr.mxu0 0.0
    %1576 = vmatpush2.msra.mxu0 0.0
    %1577 = vmatprep.subr.mxu0 0.0
    %1578 = vmatpush2.msra.mxu0 0.0
    %1579 = vmatprep.subr.mxu0 0.0
    %1580 = vmatpush2.msra.mxu0 0.0
    %1581 = vmatprep.subr.mxu0 0.0
    %1582 = vmatpush2.msra.mxu0 0.0
    %1583 = vmatprep.subr.mxu0 0.0
    %1584 = vmatpush2.msra.mxu0 0.0
    %1585 = vmatprep.subr.mxu0 0.0
    %1586 = vmatpush2.msra.mxu0 0.0
    %1587 = vmatprep.subr.mxu0 0.0
    %1588 = vmatpush2.msra.mxu0 0.0
    %1589 = vmatprep.subr.mxu0 0.0
    %1590 = vmatpush2.msra.mxu0 0.0
    %1591 = vmatprep.subr.mxu0 0.0
    %1592 = vmatpush2.msra.mxu0 0.0
    %1593 = vmatprep.subr.mxu0 0.0
    %1594 = vmatpush2.msra.mxu0 0.0
    %1595 = vmatprep.subr.mxu0 0.0
    %1596 = vmatpush2.msra.mxu0 0.0
    %1597 = vmatprep.mubr.f32.mxu0 0.0
    %1598 = vmatmul.mubr.f32.gmra.mxu0 %v1531
    %v1599 = vpop.f32.mrf.mxu0
    %v1600 = vadd.f32 0.0, %v1599
    %v1601 = vpop.f32.mrf.mxu0
    %1602 = vdwg.mxu0
    %v1603 = vadd.f32 %v1530, %v1600
    %s1604 = scalar_lea.vmem [#allocation3], 8
    %v1605 = vld [vmem:[%s1604] sm:$0xff]
    %v1606 = vsel %vm284, %v1525, 0
    %1608 = vmatprep.subr.mxu0 0.0
    %1609 = vmatpush1.msra.mxu0 0.0
    %1610 = vmatprep.subr.mxu0 0.0
    %1611 = vmatpush1.msra.mxu0 0.0
    %1612 = vmatprep.subr.mxu0 0.0
    %1613 = vmatpush1.msra.mxu0 0.0
    %1614 = vmatprep.subr.mxu0 0.0
    %1615 = vmatpush1.msra.mxu0 0.0
    %1616 = vmatprep.subr.mxu0 0.0
    %1617 = vmatpush1.msra.mxu0 0.0
    %1618 = vmatprep.subr.mxu0 0.0
    %1619 = vmatpush1.msra.mxu0 0.0
    %1620 = vmatprep.subr.mxu0 0.0
    %1621 = vmatpush1.msra.mxu0 0.0
    %1622 = vmatprep.subr.mxu0 0.0
    %1623 = vmatpush1.msra.mxu0 0.0
    %1624 = vmatprep.subr.mxu0 0.0
    %1625 = vmatpush1.msra.mxu0 0.0
    %1626 = vmatprep.subr.mxu0 0.0
    %1627 = vmatpush1.msra.mxu0 0.0
    %1628 = vmatprep.subr.mxu0 0.0
    %1629 = vmatpush1.msra.mxu0 0.0
    %1630 = vmatprep.subr.mxu0 0.0
    %1631 = vmatpush1.msra.mxu0 0.0
    %1632 = vmatprep.subr.mxu0 0.0
    %1633 = vmatpush1.msra.mxu0 %v282
    %1634 = vmatprep.subr.mxu0 0.0
    %1635 = vmatpush1.msra.mxu0 %v281
    %1636 = vmatprep.subr.mxu0 0.0
    %1637 = vmatpush1.msra.mxu0 %v280
    %1638 = vmatprep.subr.mxu0 0.0
    %1639 = vmatpush1.msra.mxu0 %v279
    %1640 = vmatprep.subr.mxu0 0.0
    %1641 = vmatpush2.msra.mxu0 0.0
    %1642 = vmatprep.subr.mxu0 0.0
    %1643 = vmatpush2.msra.mxu0 0.0
    %1644 = vmatprep.subr.mxu0 0.0
    %1645 = vmatpush2.msra.mxu0 0.0
    %1646 = vmatprep.subr.mxu0 0.0
    %1647 = vmatpush2.msra.mxu0 0.0
    %1648 = vmatprep.subr.mxu0 0.0
    %1649 = vmatpush2.msra.mxu0 0.0
    %1650 = vmatprep.subr.mxu0 0.0
    %1651 = vmatpush2.msra.mxu0 0.0
    %1652 = vmatprep.subr.mxu0 0.0
    %1653 = vmatpush2.msra.mxu0 0.0
    %1654 = vmatprep.subr.mxu0 0.0
    %1655 = vmatpush2.msra.mxu0 0.0
    %1656 = vmatprep.subr.mxu0 0.0
    %1657 = vmatpush2.msra.mxu0 0.0
    %1658 = vmatprep.subr.mxu0 0.0
    %1659 = vmatpush2.msra.mxu0 0.0
    %1660 = vmatprep.subr.mxu0 0.0
    %1661 = vmatpush2.msra.mxu0 0.0
    %1662 = vmatprep.subr.mxu0 0.0
    %1663 = vmatpush2.msra.mxu0 0.0
    %1664 = vmatprep.subr.mxu0 0.0
    %1665 = vmatpush2.msra.mxu0 0.0
    %1666 = vmatprep.subr.mxu0 0.0
    %1667 = vmatpush2.msra.mxu0 0.0
    %1668 = vmatprep.subr.mxu0 0.0
    %1669 = vmatpush2.msra.mxu0 0.0
    %1670 = vmatprep.subr.mxu0 0.0
    %1671 = vmatpush2.msra.mxu0 0.0
    %1672 = vmatprep.mubr.f32.mxu0 0.0
    %1673 = vmatmul.mubr.f32.gmra.mxu0 %v1606
    %v1674 = vpop.f32.mrf.mxu0
    %v1675 = vadd.f32 0.0, %v1674
    %v1676 = vpop.f32.mrf.mxu0
    %1677 = vdwg.mxu0
    %v1678 = vadd.f32 %v1605, %v1675
    %v1679 = vsub.f32 0.0, %v1603
    %v1680 = vmul.f32 %v1679, 1.442695
    %v1681 = vpow.pop %v1680
    %v1682 = vadd.f32 %v1681, 1.0
    %v1683 = vrcp.pop %v1682
    %v1684 = vtanh.pop %v1603
    %v1685 = vmul.f32 %v1683, %v1487
    %1687 = vrot.lane.b32.xlu0 %v1684, 64
    %v1688 = vpop.permute.xlu0 %1687
    %v1690 = vmul.f32 %v1683, %v1688
    %1692 = vrot.lane.b32.xlu0 %v1690, 32
    %v1693 = vpop.permute.xlu0 %1692
    %v1695 = vadd.f32 %v1685, %v1693
    %v1696 = vtanh.pop %v1695
    %1698 = vrot.lane.b32.xlu0 %v1696, 64
    %v1699 = vpop.permute.xlu0 %1698
    %v1701 = vmul.f32 %v1683, %v1699
    %v1702 = vsub.f32 0.0, %v1678
    %v1703 = vmul.f32 %v1702, 1.442695
    %v1704 = vpow.pop %v1703
    %v1705 = vadd.f32 %v1704, 1.0
    %v1706 = vrcp.pop %v1705
    %v1707 = vtanh.pop %v1678
    %v1708 = vmul.f32 %v1706, %v1510
    %1710 = vrot.lane.b32.xlu0 %v1707, 64
    %v1711 = vpop.permute.xlu0 %1710
    %v1713 = vmul.f32 %v1706, %v1711
    %1715 = vrot.lane.b32.xlu0 %v1713, 32
    %v1716 = vpop.permute.xlu0 %1715
    %v1718 = vadd.f32 %v1708, %v1716
    %v1719 = vtanh.pop %v1718
    %1721 = vrot.lane.b32.xlu0 %v1719, 64
    %v1722 = vpop.permute.xlu0 %1721
    %v1724 = vmul.f32 %v1706, %v1722
    %1726 = vrot.lane.b32.xlu0 %v1701, 32
    %v1727 = vpop.permute.xlu0 %1726
    %s1729 = scalar_lea.vmem [#allocation10], 48
    %1730 = vst.msk [vmem:[%s1729] sm:$0xff] %vm284, %v1727
    %1732 = vrot.lane.b32.xlu0 %v1724, 32
    %v1733 = vpop.permute.xlu0 %1732
    %s1735 = scalar_lea.vmem [#allocation10], 72
    %1736 = vst.msk [vmem:[%s1735] sm:$0xff] %vm284, %v1733
    %s1737 = scalar_lea.vmem [#allocation2], 56
    %v1738 = vld [vmem:[%s1737] sm:$0xff]
    %v1739 = vsel %vm284, %v1727, 0
    %1741 = vmatprep.subr.mxu0 0.0
    %1742 = vmatpush1.msra.mxu0 0.0
    %1743 = vmatprep.subr.mxu0 0.0
    %1744 = vmatpush1.msra.mxu0 0.0
    %1745 = vmatprep.subr.mxu0 0.0
    %1746 = vmatpush1.msra.mxu0 0.0
    %1747 = vmatprep.subr.mxu0 0.0
    %1748 = vmatpush1.msra.mxu0 0.0
    %1749 = vmatprep.subr.mxu0 0.0
    %1750 = vmatpush1.msra.mxu0 0.0
    %1751 = vmatprep.subr.mxu0 0.0
    %1752 = vmatpush1.msra.mxu0 0.0
    %1753 = vmatprep.subr.mxu0 0.0
    %1754 = vmatpush1.msra.mxu0 0.0
    %1755 = vmatprep.subr.mxu0 0.0
    %1756 = vmatpush1.msra.mxu0 0.0
    %1757 = vmatprep.subr.mxu0 0.0
    %1758 = vmatpush1.msra.mxu0 0.0
    %1759 = vmatprep.subr.mxu0 0.0
    %1760 = vmatpush1.msra.mxu0 0.0
    %1761 = vmatprep.subr.mxu0 0.0
    %1762 = vmatpush1.msra.mxu0 0.0
    %1763 = vmatprep.subr.mxu0 0.0
    %1764 = vmatpush1.msra.mxu0 0.0
    %1765 = vmatprep.subr.mxu0 0.0
    %1766 = vmatpush1.msra.mxu0 %v277
    %1767 = vmatprep.subr.mxu0 0.0
    %1768 = vmatpush1.msra.mxu0 %v276
    %1769 = vmatprep.subr.mxu0 0.0
    %1770 = vmatpush1.msra.mxu0 %v275
    %1771 = vmatprep.subr.mxu0 0.0
    %1772 = vmatpush1.msra.mxu0 %v274
    %1773 = vmatprep.subr.mxu0 0.0
    %1774 = vmatpush2.msra.mxu0 0.0
    %1775 = vmatprep.subr.mxu0 0.0
    %1776 = vmatpush2.msra.mxu0 0.0
    %1777 = vmatprep.subr.mxu0 0.0
    %1778 = vmatpush2.msra.mxu0 0.0
    %1779 = vmatprep.subr.mxu0 0.0
    %1780 = vmatpush2.msra.mxu0 0.0
    %1781 = vmatprep.subr.mxu0 0.0
    %1782 = vmatpush2.msra.mxu0 0.0
    %1783 = vmatprep.subr.mxu0 0.0
    %1784 = vmatpush2.msra.mxu0 0.0
    %1785 = vmatprep.subr.mxu0 0.0
    %1786 = vmatpush2.msra.mxu0 0.0
    %1787 = vmatprep.subr.mxu0 0.0
    %1788 = vmatpush2.msra.mxu0 0.0
    %1789 = vmatprep.subr.mxu0 0.0
    %1790 = vmatpush2.msra.mxu0 0.0
    %1791 = vmatprep.subr.mxu0 0.0
    %1792 = vmatpush2.msra.mxu0 0.0
    %1793 = vmatprep.subr.mxu0 0.0
    %1794 = vmatpush2.msra.mxu0 0.0
    %1795 = vmatprep.subr.mxu0 0.0
    %1796 = vmatpush2.msra.mxu0 0.0
    %1797 = vmatprep.subr.mxu0 0.0
    %1798 = vmatpush2.msra.mxu0 0.0
    %1799 = vmatprep.subr.mxu0 0.0
    %1800 = vmatpush2.msra.mxu0 0.0
    %1801 = vmatprep.subr.mxu0 0.0
    %1802 = vmatpush2.msra.mxu0 0.0
    %1803 = vmatprep.subr.mxu0 0.0
    %1804 = vmatpush2.msra.mxu0 0.0
    %1805 = vmatprep.mubr.f32.mxu0 0.0
    %1806 = vmatmul.mubr.f32.gmra.mxu0 %v1739
    %v1807 = vpop.f32.mrf.mxu0
    %v1808 = vadd.f32 0.0, %v1807
    %v1809 = vpop.f32.mrf.mxu0
    %1810 = vdwg.mxu0
    %v1811 = vadd.f32 %v1738, %v1808
    %v1812 = vld [vmem:[#allocation3] sm:$0xff]
    %v1813 = vsel %vm284, %v1733, 0
    %1815 = vmatprep.subr.mxu0 0.0
    %1816 = vmatpush1.msra.mxu0 0.0
    %1817 = vmatprep.subr.mxu0 0.0
    %1818 = vmatpush1.msra.mxu0 0.0
    %1819 = vmatprep.subr.mxu0 0.0
    %1820 = vmatpush1.msra.mxu0 0.0
    %1821 = vmatprep.subr.mxu0 0.0
    %1822 = vmatpush1.msra.mxu0 0.0
    %1823 = vmatprep.subr.mxu0 0.0
    %1824 = vmatpush1.msra.mxu0 0.0
    %1825 = vmatprep.subr.mxu0 0.0
    %1826 = vmatpush1.msra.mxu0 0.0
    %1827 = vmatprep.subr.mxu0 0.0
    %1828 = vmatpush1.msra.mxu0 0.0
    %1829 = vmatprep.subr.mxu0 0.0
    %1830 = vmatpush1.msra.mxu0 0.0
    %1831 = vmatprep.subr.mxu0 0.0
    %1832 = vmatpush1.msra.mxu0 0.0
    %1833 = vmatprep.subr.mxu0 0.0
    %1834 = vmatpush1.msra.mxu0 0.0
    %1835 = vmatprep.subr.mxu0 0.0
    %1836 = vmatpush1.msra.mxu0 0.0
    %1837 = vmatprep.subr.mxu0 0.0
    %1838 = vmatpush1.msra.mxu0 0.0
    %1839 = vmatprep.subr.mxu0 0.0
    %1840 = vmatpush1.msra.mxu0 %v282
    %1841 = vmatprep.subr.mxu0 0.0
    %1842 = vmatpush1.msra.mxu0 %v281
    %1843 = vmatprep.subr.mxu0 0.0
    %1844 = vmatpush1.msra.mxu0 %v280
    %1845 = vmatprep.subr.mxu0 0.0
    %1846 = vmatpush1.msra.mxu0 %v279
    %1847 = vmatprep.subr.mxu0 0.0
    %1848 = vmatpush2.msra.mxu0 0.0
    %1849 = vmatprep.subr.mxu0 0.0
    %1850 = vmatpush2.msra.mxu0 0.0
    %1851 = vmatprep.subr.mxu0 0.0
    %1852 = vmatpush2.msra.mxu0 0.0
    %1853 = vmatprep.subr.mxu0 0.0
    %1854 = vmatpush2.msra.mxu0 0.0
    %1855 = vmatprep.subr.mxu0 0.0
    %1856 = vmatpush2.msra.mxu0 0.0
    %1857 = vmatprep.subr.mxu0 0.0
    %1858 = vmatpush2.msra.mxu0 0.0
    %1859 = vmatprep.subr.mxu0 0.0
    %1860 = vmatpush2.msra.mxu0 0.0
    %1861 = vmatprep.subr.mxu0 0.0
    %1862 = vmatpush2.msra.mxu0 0.0
    %1863 = vmatprep.subr.mxu0 0.0
    %1864 = vmatpush2.msra.mxu0 0.0
    %1865 = vmatprep.subr.mxu0 0.0
    %1866 = vmatpush2.msra.mxu0 0.0
    %1867 = vmatprep.subr.mxu0 0.0
    %1868 = vmatpush2.msra.mxu0 0.0
    %1869 = vmatprep.subr.mxu0 0.0
    %1870 = vmatpush2.msra.mxu0 0.0
    %1871 = vmatprep.subr.mxu0 0.0
    %1872 = vmatpush2.msra.mxu0 0.0
    %1873 = vmatprep.subr.mxu0 0.0
    %1874 = vmatpush2.msra.mxu0 0.0
    %1875 = vmatprep.subr.mxu0 0.0
    %1876 = vmatpush2.msra.mxu0 0.0
    %1877 = vmatprep.subr.mxu0 0.0
    %1878 = vmatpush2.msra.mxu0 0.0
    %1879 = vmatprep.mubr.f32.mxu0 0.0
    %1880 = vmatmul.mubr.f32.gmra.mxu0 %v1813
    %v1881 = vpop.f32.mrf.mxu0
    %v1882 = vadd.f32 0.0, %v1881
    %v1883 = vpop.f32.mrf.mxu0
    %1884 = vdwg.mxu0
    %v1885 = vadd.f32 %v1812, %v1882
    %v1886 = vsub.f32 0.0, %v1811
    %v1887 = vmul.f32 %v1886, 1.442695
    %v1888 = vpow.pop %v1887
    %v1889 = vadd.f32 %v1888, 1.0
    %v1890 = vrcp.pop %v1889
    %v1891 = vtanh.pop %v1811
    %v1892 = vmul.f32 %v1890, %v1695
    %1894 = vrot.lane.b32.xlu0 %v1891, 64
    %v1895 = vpop.permute.xlu0 %1894
    %v1897 = vmul.f32 %v1890, %v1895
    %1899 = vrot.lane.b32.xlu0 %v1897, 32
    %v1900 = vpop.permute.xlu0 %1899
    %v1902 = vadd.f32 %v1892, %v1900
    %v1903 = vtanh.pop %v1902
    %1905 = vrot.lane.b32.xlu0 %v1903, 64
    %v1906 = vpop.permute.xlu0 %1905
    %v1908 = vmul.f32 %v1890, %v1906
    %v1909 = vsub.f32 0.0, %v1885
    %v1910 = vmul.f32 %v1909, 1.442695
    %v1911 = vpow.pop %v1910
    %v1912 = vadd.f32 %v1911, 1.0
    %v1913 = vrcp.pop %v1912
    %v1914 = vtanh.pop %v1885
    %v1915 = vmul.f32 %v1913, %v1718
    %1917 = vrot.lane.b32.xlu0 %v1914, 64
    %v1918 = vpop.permute.xlu0 %1917
    %v1920 = vmul.f32 %v1913, %v1918
    %1922 = vrot.lane.b32.xlu0 %v1920, 32
    %v1923 = vpop.permute.xlu0 %1922
    %v1925 = vadd.f32 %v1915, %v1923
    %v1926 = vtanh.pop %v1925
    %1928 = vrot.lane.b32.xlu0 %v1926, 64
    %v1929 = vpop.permute.xlu0 %1928
    %v1931 = vmul.f32 %v1913, %v1929
    %1933 = vrot.lane.b32.xlu0 %v1908, 32
    %v1934 = vpop.permute.xlu0 %1933
    %s1936 = scalar_lea.vmem [#allocation10], 56
    %1937 = vst.msk [vmem:[%s1936] sm:$0xff] %vm284, %v1934
    %1939 = vrot.lane.b32.xlu0 %v1931, 32
    %v1940 = vpop.permute.xlu0 %1939
    %s1942 = scalar_lea.vmem [#allocation10], 64
    %1943 = vst.msk [vmem:[%s1942] sm:$0xff] %vm284, %v1940
    // Predicated region
    $region30: #{tpu_custom_call.1} parent=1 // pred_check
      _
    $region31: #{tpu_custom_call.1} parent=1 // pred_check_branch
      %1945 = sbr.rel (0) target = $region33
    $region32: #{tpu_custom_call.1} parent=1 // pred_region
      %s1947 = ssub.s32 2048, 2048
      %1948 = vsyncadd [#allocation6], %s1947
      %s1949 = sshll.u32 [#allocation10], 4
      %s1950 = int_to_ptr.vmem [resolvable:$true] %s1949
      %1955 = dma.vmem_to_hbm [thread:$0]  %s1950, 2048, %s4, [#allocation6], 128, 128, 8
    $region33: #{tpu_custom_call.1} parent=1 // pred_fallthru
      _
    // Predicated region
    $region34: #{tpu_custom_call.1} parent=1 // pred_check
      _
    $region35: #{tpu_custom_call.1} parent=1 // pred_check_branch
      %1957 = sbr.rel (0) target = $region37
    $region36: #{tpu_custom_call.1} parent=1 // pred_region
      %1958 = dma.done [#allocation6], 2048
    $region37: #{tpu_custom_call.1} parent=1 // pred_fallthru
      _
    %1959 = vsyncpa [#allocation5], 1
    %1960 = vsyncpa [#allocation8], 1
    %1961 = vsyncpa [#allocation6], 1

</llo_original>
